<compile_context>
chip_gen: v5e
topology: v5e:2x2
jax: 0.10.0
libtpu: 0.0.40
codegen_flags: <defaults>
</compile_context>

<pallas_src>
import functools

import jax
import jax.numpy as jnp
from jax.experimental import pallas as pl
from jax.experimental.pallas import tpu as pltpu


def _round_up(x, m):
    return ((x + m - 1) // m) * m


def _cdiv(a, b):
    return -(-a // b)


# ---------------------------------------------------------------------------
# Pallas kernel: fused  out = act(X @ W + b)
# ---------------------------------------------------------------------------
def _gemm_bias_act_kernel(x_ref, w_ref, b_ref, o_ref, *, apply_act):
    acc = jnp.dot(x_ref[...], w_ref[...], preferred_element_type=jnp.float32)
    acc = acc + b_ref[...]                        # (tile_m, Np) + (1, Np)
    if apply_act:
        acc = jnp.maximum(acc, 0.0)               # config.activation == "ReLU"
    o_ref[...] = acc.astype(o_ref.dtype)


def gemm_bias_act(x, w, b, apply_act=False):
    """act((M, K) @ (K, N) + b) on the MXU.

    - operands cast to bf16, f32 accumulation (preferred_element_type)
    - N zero-padded to a multiple of 128 -> lane-dense, unmasked output stores
    - K zero-padded to a multiple of 8 (cheap sublane alignment)
    - M padded only to the row tile (multiple of 16); >=2 grid steps when M is
      large so ("parallel",) can split rows across TensorCores on v7x
    """
    M, K = x.shape
    K2, N = w.shape
    assert K == K2 and b.shape == (N,)

    Np = _round_up(N, 128)
    Kp = _round_up(K, 8)
    grid_m = 1 if M <= 256 else max(2, _cdiv(M, 512))
    tile_m = _round_up(_cdiv(M, grid_m), 16)
    Mp = tile_m * grid_m

    x_p = jnp.pad(x, ((0, Mp - M), (0, Kp - K))).astype(jnp.bfloat16)
    w_p = jnp.pad(w, ((0, Kp - K), (0, Np - N))).astype(jnp.bfloat16)
    b_p = jnp.pad(b, (0, Np - N)).astype(jnp.float32).reshape(1, Np)

    out = pl.pallas_call(
        functools.partial(_gemm_bias_act_kernel, apply_act=apply_act),
        out_shape=jax.ShapeDtypeStruct((Mp, Np), jnp.float32),
        grid_spec=pltpu.PrefetchScalarGridSpec(
            num_scalar_prefetch=0,
            grid=(grid_m,),
            in_specs=[
                pl.BlockSpec((tile_m, Kp), lambda i: (i, 0)),
                pl.BlockSpec((Kp, Np), lambda i: (0, 0)),
                pl.BlockSpec((1, Np), lambda i: (0, 0)),
            ],
            out_specs=pl.BlockSpec((tile_m, Np), lambda i: (i, 0)),
        ),
        compiler_params=pltpu.CompilerParams(
            dimension_semantics=("parallel",)),
    )(x_p, w_p, b_p)
    return out[:M, :N]


# ---------------------------------------------------------------------------
# ConvTranspose2d (padding=0) on NHWC activations, input-gather formulation
# ---------------------------------------------------------------------------
def conv_transpose2d_nhwc(x, w_t, bias, stride, apply_act):
    """x: (B, H, W, Cin) NHWC; w_t: (Cin, Cout, k, k) (PyTorch layout)."""
    B, H, W, Cin = x.shape
    Cin2, Cout, k, k2 = w_t.shape
    assert Cin == Cin2 and k == k2
    s = stride
    OH = (H - 1) * s + k
    OW = (W - 1) * s + k

    w_mat = w_t.reshape(Cin, Cout * k * k)        # column order (co, kh, kw)
    x_flat = x.reshape(B * H * W, Cin)

    if H == 1 and W == 1:
        # Single input pixel: every output pixel gets exactly one tap, so the
        # per-Cout bias and the activation fuse straight into the Pallas GEMM
        # and col2im degenerates into a reshape.
        b_cols = jnp.repeat(bias, k * k)
        z = gemm_bias_act(x_flat, w_mat, b_cols, apply_act=apply_act)
        return z.reshape(B, Cout, k, k).transpose(0, 2, 3, 1)   # (B, k, k, Cout)

    z = gemm_bias_act(x_flat, w_mat,
                      jnp.zeros((Cout * k * k,), jnp.float32), apply_act=False)
    z = z.reshape(B, H, W, Cout, k, k)

    # TODO(synk): the col2im overlap-add + bias/ReLU epilogue is tiny strided
    # data movement / elementwise work left to XLA; it could be folded into a
    # Pallas kernel with strided VMEM read-modify-writes if it ever dominates.
    y = jnp.zeros((B, OH, OW, Cout), jnp.float32)
    for kh in range(k):
        for kw in range(k):
            y = y.at[:, kh:kh + s * (H - 1) + 1:s,
                        kw:kw + s * (W - 1) + 1:s, :].add(z[..., kh, kw])
    y = y + bias.reshape(1, 1, 1, Cout)
    if apply_act:
        y = jnp.maximum(y, 0.0)
    return y


# ---------------------------------------------------------------------------
# Decoder module (parameters + forward)
# ---------------------------------------------------------------------------
class DecoderConfig:
    depth = 4
    kernel_size = 5
    stride = 2
    activation = "ReLU"


def init_decoder_params(key, input_size, obs_channels, cfg):
    d, k = cfg.depth, cfg.kernel_size
    ks = jax.random.split(key, 10)

    def w(kk, shape):
        return 0.1 * jax.random.normal(kk, shape, dtype=jnp.float32)

    return {
        "lin_w": w(ks[0], (input_size, d * 32)),
        "lin_b": w(ks[1], (d * 32,)),
        "w1": w(ks[2], (d * 32, d * 4, k, k)),      "b1": w(ks[3], (d * 4,)),
        "w2": w(ks[4], (d * 4, d * 2, k, k)),       "b2": w(ks[5], (d * 2,)),
        "w3": w(ks[6], (d * 2, d, k + 1, k + 1)),   "b3": w(ks[7], (d,)),
        "w4": w(ks[8], (d, obs_channels, k + 1, k + 1)),
        "b4": w(ks[9], (obs_channels,)),
    }


def decoder_forward(params, x, input_size, observation_shape, cfg):
    # horizontal_forward: flatten leading batch/horizon dims.
    batch_shape = x.shape[:-1]
    if batch_shape == ():
        batch_shape = (1,)
    h = x.reshape(-1, input_size)
    B = h.shape[0]

    # Linear(inputSize, depth*32) -- no activation before the first deconv.
    h = gemm_bias_act(h, params["lin_w"], params["lin_b"], apply_act=False)
    # Unflatten -> (B, 1, 1, depth*32) NHWC; activations stay NHWC end-to-end.
    h = h.reshape(B, 1, 1, cfg.depth * 32)

    h = conv_transpose2d_nhwc(h, params["w1"], params["b1"], cfg.stride, True)
    h = conv_transpose2d_nhwc(h, params["w2"], params["b2"], cfg.stride, True)
    h = conv_transpose2d_nhwc(h, params["w3"], params["b3"], cfg.stride, True)
    h = conv_transpose2d_nhwc(h, params["w4"], params["b4"], cfg.stride, False)

    # Single NHWC -> NCHW transpose at the very end (observation layout).
    mean = h.transpose(0, 3, 1, 2).reshape(*batch_shape, *observation_shape)
    # create_normal_dist(x, std=1, event_shape=3):
    # Independent(Normal(mean, 1), 3) -- represented by (mean, std).
    std = jnp.ones_like(mean)
    return mean, std


if __name__ == "__main__":
    key = jax.random.PRNGKey(0)
    k_param, k_x = jax.random.split(key)

    cfg = DecoderConfig()
    input_size = 32
    observation_shape = (3, 64, 64)   # k=5,s=2 then k=6: 1 -> 5 -> 13 -> 30 -> 64

    params = init_decoder_params(k_param, input_size, observation_shape[0], cfg)
    x = jax.random.normal(k_x, (2, input_size), dtype=jnp.float32)

    fwd = jax.jit(functools.partial(decoder_forward, input_size=input_size,
                                    observation_shape=observation_shape, cfg=cfg))
    mean, std = fwd(params, x)
    jax.block_until_ready(mean)
    jax.block_until_ready(std)

    assert mean.shape == (2,) + observation_shape, mean.shape
    assert std.shape == mean.shape
    assert bool(jnp.all(jnp.isfinite(mean)))
    print("KERNEL_OK")
</pallas_src>

<mosaic_0001>
module attributes {stable_mosaic.version = 11 : i64} {
  func.func @_gemm_bias_act_kernel(%arg0: i32, %arg1: memref<16x32xbf16, #tpu.memory_space<vmem>>, %arg2: memref<32x128xbf16, #tpu.memory_space<vmem>>, %arg3: memref<1x128xf32, #tpu.memory_space<vmem>>, %arg4: memref<16x128xf32, #tpu.memory_space<vmem>>) attributes {dimension_semantics = [#tpu.dimension_semantics<parallel>], iteration_bounds = array<i64: 1>, scalar_prefetch = 0 : i64, scratch_operands = 0 : i64, tpu.core_type = #tpu.core_type<tc>, window_params = [{transform_indices = @transform_0, window_bounds = array<i64: 16, 32>}, {pipeline_mode = #tpu.pipeline_mode<synchronous>, transform_indices = @transform_1, window_bounds = array<i64: 32, 128>}, {pipeline_mode = #tpu.pipeline_mode<synchronous>, transform_indices = @transform_2, window_bounds = array<i64: 1, 128>}, {transform_indices = @transform_3, window_bounds = array<i64: 16, 128>}]} {
    %c0 = arith.constant 0 : index
    %c0_0 = arith.constant 0 : index
    %0 = vector.load %arg1[%c0, %c0_0] : memref<16x32xbf16, #tpu.memory_space<vmem>>, vector<16x32xbf16>
    %c0_1 = arith.constant 0 : index
    %c0_2 = arith.constant 0 : index
    %1 = vector.load %arg2[%c0_1, %c0_2] : memref<32x128xbf16, #tpu.memory_space<vmem>>, vector<32x128xbf16>
    %cst = arith.constant dense<0.000000e+00> : vector<16x128xf32>
    %2 = tpu.matmul %0, %1, %cst {dimension_numbers = #tpu.dot_dimension_numbers<[1], [0], [0], [1], [0, 0, 1, 1], [], []>} : vector<16x32xbf16>, vector<32x128xbf16>, vector<16x128xf32> -> vector<16x128xf32>
    %c0_3 = arith.constant 0 : index
    %c0_4 = arith.constant 0 : index
    %3 = vector.load %arg3[%c0_3, %c0_4] : memref<1x128xf32, #tpu.memory_space<vmem>>, vector<1x128xf32>
    %4 = vector.broadcast %3 : vector<1x128xf32> to vector<16x128xf32>
    %5 = arith.addf %2, %4 : vector<16x128xf32>
    %c0_5 = arith.constant 0 : index
    %c0_6 = arith.constant 0 : index
    %6 = vector.load %arg4[%c0_5, %c0_6] : memref<16x128xf32, #tpu.memory_space<vmem>>, vector<16x128xf32>
    tpu.vector_store %arg4[%c0_5, %c0_6], %5 {strides = array<i32>} : memref<16x128xf32, #tpu.memory_space<vmem>>, vector<16x128xf32>,
    return
  }
  func.func @transform_0(%arg0: i32) -> (i32, i32) {
    %c0_i32 = arith.constant 0 : i32
    %c0_i32_0 = arith.constant 0 : i32
    return %arg0, %c0_i32 : i32, i32
  }
  func.func @transform_1(%arg0: i32) -> (i32, i32) {
    %c0_i32 = arith.constant 0 : i32
    %c0_i32_0 = arith.constant 0 : i32
    %c0_i32_1 = arith.constant 0 : i32
    return %c0_i32, %c0_i32_0 : i32, i32
  }
  func.func @transform_2(%arg0: i32) -> (i32, i32) {
    %c0_i32 = arith.constant 0 : i32
    %c0_i32_0 = arith.constant 0 : i32
    %c0_i32_1 = arith.constant 0 : i32
    return %c0_i32, %c0_i32_0 : i32, i32
  }
  func.func @transform_3(%arg0: i32) -> (i32, i32) {
    %c0_i32 = arith.constant 0 : i32
    %c0_i32_0 = arith.constant 0 : i32
    return %arg0, %c0_i32 : i32, i32
  }
}

module attributes {stable_mosaic.version = 11 : i64} {
  func.func @_gemm_bias_act_kernel(%arg0: i32, %arg1: memref<16x128xbf16, #tpu.memory_space<vmem>>, %arg2: memref<128x512xbf16, #tpu.memory_space<vmem>>, %arg3: memref<1x512xf32, #tpu.memory_space<vmem>>, %arg4: memref<16x512xf32, #tpu.memory_space<vmem>>) attributes {dimension_semantics = [#tpu.dimension_semantics<parallel>], iteration_bounds = array<i64: 1>, scalar_prefetch = 0 : i64, scratch_operands = 0 : i64, tpu.core_type = #tpu.core_type<tc>, window_params = [{transform_indices = @transform_0, window_bounds = array<i64: 16, 128>}, {pipeline_mode = #tpu.pipeline_mode<synchronous>, transform_indices = @transform_1, window_bounds = array<i64: 128, 512>}, {pipeline_mode = #tpu.pipeline_mode<synchronous>, transform_indices = @transform_2, window_bounds = array<i64: 1, 512>}, {transform_indices = @transform_3, window_bounds = array<i64: 16, 512>}]} {
    %c0 = arith.constant 0 : index
    %c0_0 = arith.constant 0 : index
    %0 = vector.load %arg1[%c0, %c0_0] : memref<16x128xbf16, #tpu.memory_space<vmem>>, vector<16x128xbf16>
    %c0_1 = arith.constant 0 : index
    %c0_2 = arith.constant 0 : index
    %1 = vector.load %arg2[%c0_1, %c0_2] : memref<128x512xbf16, #tpu.memory_space<vmem>>, vector<128x512xbf16>
    %cst = arith.constant dense<0.000000e+00> : vector<16x512xf32>
    %2 = tpu.matmul %0, %1, %cst {dimension_numbers = #tpu.dot_dimension_numbers<[1], [0], [0], [1], [0, 0, 1, 1], [], []>} : vector<16x128xbf16>, vector<128x512xbf16>, vector<16x512xf32> -> vector<16x512xf32>
    %c0_3 = arith.constant 0 : index
    %c0_4 = arith.constant 0 : index
    %3 = vector.load %arg3[%c0_3, %c0_4] : memref<1x512xf32, #tpu.memory_space<vmem>>, vector<1x512xf32>
    %4 = vector.broadcast %3 : vector<1x512xf32> to vector<16x512xf32>
    %5 = arith.addf %2, %4 : vector<16x512xf32>
    %cst_5 = arith.constant 0.000000e+00 : f32
    %6 = vector.broadcast %cst_5 : f32 to vector<16x512xf32>
    %7 = arith.maximumf %5, %6 : vector<16x512xf32>
    %c0_6 = arith.constant 0 : index
    %c0_7 = arith.constant 0 : index
    %8 = vector.load %arg4[%c0_6, %c0_7] : memref<16x512xf32, #tpu.memory_space<vmem>>, vector<16x512xf32>
    tpu.vector_store %arg4[%c0_6, %c0_7], %7 {strides = array<i32>} : memref<16x512xf32, #tpu.memory_space<vmem>>, vector<16x512xf32>,
    return
  }
  func.func @transform_0(%arg0: i32) -> (i32, i32) {
    %c0_i32 = arith.constant 0 : i32
    %c0_i32_0 = arith.constant 0 : i32
    return %arg0, %c0_i32 : i32, i32
  }
  func.func @transform_1(%arg0: i32) -> (i32, i32) {
    %c0_i32 = arith.constant 0 : i32
    %c0_i32_0 = arith.constant 0 : i32
    %c0_i32_1 = arith.constant 0 : i32
    return %c0_i32, %c0_i32_0 : i32, i32
  }
  func.func @transform_2(%arg0: i32) -> (i32, i32) {
    %c0_i32 = arith.constant 0 : i32
    %c0_i32_0 = arith.constant 0 : i32
    %c0_i32_1 = arith.constant 0 : i32
    return %c0_i32, %c0_i32_0 : i32, i32
  }
  func.func @transform_3(%arg0: i32) -> (i32, i32) {
    %c0_i32 = arith.constant 0 : i32
    %c0_i32_0 = arith.constant 0 : i32
    return %arg0, %c0_i32 : i32, i32
  }
}

module attributes {stable_mosaic.version = 11 : i64} {
  func.func @_gemm_bias_act_kernel(%arg0: i32, %arg1: memref<64x16xbf16, #tpu.memory_space<vmem>>, %arg2: memref<16x256xbf16, #tpu.memory_space<vmem>>, %arg3: memref<1x256xf32, #tpu.memory_space<vmem>>, %arg4: memref<64x256xf32, #tpu.memory_space<vmem>>) attributes {dimension_semantics = [#tpu.dimension_semantics<parallel>], iteration_bounds = array<i64: 1>, scalar_prefetch = 0 : i64, scratch_operands = 0 : i64, tpu.core_type = #tpu.core_type<tc>, window_params = [{transform_indices = @transform_0, window_bounds = array<i64: 64, 16>}, {pipeline_mode = #tpu.pipeline_mode<synchronous>, transform_indices = @transform_1, window_bounds = array<i64: 16, 256>}, {pipeline_mode = #tpu.pipeline_mode<synchronous>, transform_indices = @transform_2, window_bounds = array<i64: 1, 256>}, {transform_indices = @transform_3, window_bounds = array<i64: 64, 256>}]} {
    %c0 = arith.constant 0 : index
    %c0_0 = arith.constant 0 : index
    %0 = vector.load %arg1[%c0, %c0_0] : memref<64x16xbf16, #tpu.memory_space<vmem>>, vector<64x16xbf16>
    %c0_1 = arith.constant 0 : index
    %c0_2 = arith.constant 0 : index
    %1 = vector.load %arg2[%c0_1, %c0_2] : memref<16x256xbf16, #tpu.memory_space<vmem>>, vector<16x256xbf16>
    %cst = arith.constant dense<0.000000e+00> : vector<64x256xf32>
    %2 = tpu.matmul %0, %1, %cst {dimension_numbers = #tpu.dot_dimension_numbers<[1], [0], [0], [1], [0, 0, 1, 1], [], []>} : vector<64x16xbf16>, vector<16x256xbf16>, vector<64x256xf32> -> vector<64x256xf32>
    %c0_3 = arith.constant 0 : index
    %c0_4 = arith.constant 0 : index
    %3 = vector.load %arg3[%c0_3, %c0_4] : memref<1x256xf32, #tpu.memory_space<vmem>>, vector<1x256xf32>
    %4 = vector.broadcast %3 : vector<1x256xf32> to vector<64x256xf32>
    %5 = arith.addf %2, %4 : vector<64x256xf32>
    %c0_5 = arith.constant 0 : index
    %c0_6 = arith.constant 0 : index
    %6 = vector.load %arg4[%c0_5, %c0_6] : memref<64x256xf32, #tpu.memory_space<vmem>>, vector<64x256xf32>
    tpu.vector_store %arg4[%c0_5, %c0_6], %5 {strides = array<i32>} : memref<64x256xf32, #tpu.memory_space<vmem>>, vector<64x256xf32>,
    return
  }
  func.func @transform_0(%arg0: i32) -> (i32, i32) {
    %c0_i32 = arith.constant 0 : i32
    %c0_i32_0 = arith.constant 0 : i32
    return %arg0, %c0_i32 : i32, i32
  }
  func.func @transform_1(%arg0: i32) -> (i32, i32) {
    %c0_i32 = arith.constant 0 : i32
    %c0_i32_0 = arith.constant 0 : i32
    %c0_i32_1 = arith.constant 0 : i32
    return %c0_i32, %c0_i32_0 : i32, i32
  }
  func.func @transform_2(%arg0: i32) -> (i32, i32) {
    %c0_i32 = arith.constant 0 : i32
    %c0_i32_0 = arith.constant 0 : i32
    %c0_i32_1 = arith.constant 0 : i32
    return %c0_i32, %c0_i32_0 : i32, i32
  }
  func.func @transform_3(%arg0: i32) -> (i32, i32) {
    %c0_i32 = arith.constant 0 : i32
    %c0_i32_0 = arith.constant 0 : i32
    return %arg0, %c0_i32 : i32, i32
  }
}

module attributes {stable_mosaic.version = 11 : i64} {
  func.func @_gemm_bias_act_kernel(%arg0: i32, %arg1: memref<176x8xbf16, #tpu.memory_space<vmem>>, %arg2: memref<8x256xbf16, #tpu.memory_space<vmem>>, %arg3: memref<1x256xf32, #tpu.memory_space<vmem>>, %arg4: memref<176x256xf32, #tpu.memory_space<vmem>>) attributes {dimension_semantics = [#tpu.dimension_semantics<parallel>], iteration_bounds = array<i64: 2>, scalar_prefetch = 0 : i64, scratch_operands = 0 : i64, tpu.core_type = #tpu.core_type<tc>, window_params = [{transform_indices = @transform_0, window_bounds = array<i64: 176, 8>}, {pipeline_mode = #tpu.pipeline_mode<synchronous>, transform_indices = @transform_1, window_bounds = array<i64: 8, 256>}, {pipeline_mode = #tpu.pipeline_mode<synchronous>, transform_indices = @transform_2, window_bounds = array<i64: 1, 256>}, {transform_indices = @transform_3, window_bounds = array<i64: 176, 256>}]} {
    %c0 = arith.constant 0 : index
    %c0_0 = arith.constant 0 : index
    %0 = vector.load %arg1[%c0, %c0_0] : memref<176x8xbf16, #tpu.memory_space<vmem>>, vector<176x8xbf16>
    %c0_1 = arith.constant 0 : index
    %c0_2 = arith.constant 0 : index
    %1 = vector.load %arg2[%c0_1, %c0_2] : memref<8x256xbf16, #tpu.memory_space<vmem>>, vector<8x256xbf16>
    %cst = arith.constant dense<0.000000e+00> : vector<176x256xf32>
    %2 = tpu.matmul %0, %1, %cst {dimension_numbers = #tpu.dot_dimension_numbers<[1], [0], [0], [1], [0, 0, 1, 1], [], []>} : vector<176x8xbf16>, vector<8x256xbf16>, vector<176x256xf32> -> vector<176x256xf32>
    %c0_3 = arith.constant 0 : index
    %c0_4 = arith.constant 0 : index
    %3 = vector.load %arg3[%c0_3, %c0_4] : memref<1x256xf32, #tpu.memory_space<vmem>>, vector<1x256xf32>
    %4 = vector.broadcast %3 : vector<1x256xf32> to vector<176x256xf32>
    %5 = arith.addf %2, %4 : vector<176x256xf32>
    %c0_5 = arith.constant 0 : index
    %c0_6 = arith.constant 0 : index
    %6 = vector.load %arg4[%c0_5, %c0_6] : memref<176x256xf32, #tpu.memory_space<vmem>>, vector<176x256xf32>
    tpu.vector_store %arg4[%c0_5, %c0_6], %5 {strides = array<i32>} : memref<176x256xf32, #tpu.memory_space<vmem>>, vector<176x256xf32>,
    return
  }
  func.func @transform_0(%arg0: i32) -> (i32, i32) {
    %c0_i32 = arith.constant 0 : i32
    %c0_i32_0 = arith.constant 0 : i32
    return %arg0, %c0_i32 : i32, i32
  }
  func.func @transform_1(%arg0: i32) -> (i32, i32) {
    %c0_i32 = arith.constant 0 : i32
    %c0_i32_0 = arith.constant 0 : i32
    %c0_i32_1 = arith.constant 0 : i32
    return %c0_i32, %c0_i32_0 : i32, i32
  }
  func.func @transform_2(%arg0: i32) -> (i32, i32) {
    %c0_i32 = arith.constant 0 : i32
    %c0_i32_0 = arith.constant 0 : i32
    %c0_i32_1 = arith.constant 0 : i32
    return %c0_i32, %c0_i32_0 : i32, i32
  }
  func.func @transform_3(%arg0: i32) -> (i32, i32) {
    %c0_i32 = arith.constant 0 : i32
    %c0_i32_0 = arith.constant 0 : i32
    return %arg0, %c0_i32 : i32, i32
  }
}

module attributes {stable_mosaic.version = 11 : i64} {
  func.func @_gemm_bias_act_kernel(%arg0: i32, %arg1: memref<464x8xbf16, #tpu.memory_space<vmem>>, %arg2: memref<8x128xbf16, #tpu.memory_space<vmem>>, %arg3: memref<1x128xf32, #tpu.memory_space<vmem>>, %arg4: memref<464x128xf32, #tpu.memory_space<vmem>>) attributes {dimension_semantics = [#tpu.dimension_semantics<parallel>], iteration_bounds = array<i64: 4>, scalar_prefetch = 0 : i64, scratch_operands = 0 : i64, tpu.core_type = #tpu.core_type<tc>, window_params = [{transform_indices = @transform_0, window_bounds = array<i64: 464, 8>}, {pipeline_mode = #tpu.pipeline_mode<synchronous>, transform_indices = @transform_1, window_bounds = array<i64: 8, 128>}, {pipeline_mode = #tpu.pipeline_mode<synchronous>, transform_indices = @transform_2, window_bounds = array<i64: 1, 128>}, {transform_indices = @transform_3, window_bounds = array<i64: 464, 128>}]} {
    %c0 = arith.constant 0 : index
    %c0_0 = arith.constant 0 : index
    %0 = vector.load %arg1[%c0, %c0_0] : memref<464x8xbf16, #tpu.memory_space<vmem>>, vector<464x8xbf16>
    %c0_1 = arith.constant 0 : index
    %c0_2 = arith.constant 0 : index
    %1 = vector.load %arg2[%c0_1, %c0_2] : memref<8x128xbf16, #tpu.memory_space<vmem>>, vector<8x128xbf16>
    %cst = arith.constant dense<0.000000e+00> : vector<464x128xf32>
    %2 = tpu.matmul %0, %1, %cst {dimension_numbers = #tpu.dot_dimension_numbers<[1], [0], [0], [1], [0, 0, 1, 1], [], []>} : vector<464x8xbf16>, vector<8x128xbf16>, vector<464x128xf32> -> vector<464x128xf32>
    %c0_3 = arith.constant 0 : index
    %c0_4 = arith.constant 0 : index
    %3 = vector.load %arg3[%c0_3, %c0_4] : memref<1x128xf32, #tpu.memory_space<vmem>>, vector<1x128xf32>
    %4 = vector.broadcast %3 : vector<1x128xf32> to vector<464x128xf32>
    %5 = arith.addf %2, %4 : vector<464x128xf32>
    %c0_5 = arith.constant 0 : index
    %c0_6 = arith.constant 0 : index
    %6 = vector.load %arg4[%c0_5, %c0_6] : memref<464x128xf32, #tpu.memory_space<vmem>>, vector<464x128xf32>
    tpu.vector_store %arg4[%c0_5, %c0_6], %5 {strides = array<i32>} : memref<464x128xf32, #tpu.memory_space<vmem>>, vector<464x128xf32>,
    return
  }
  func.func @transform_0(%arg0: i32) -> (i32, i32) {
    %c0_i32 = arith.constant 0 : i32
    %c0_i32_0 = arith.constant 0 : i32
    return %arg0, %c0_i32 : i32, i32
  }
  func.func @transform_1(%arg0: i32) -> (i32, i32) {
    %c0_i32 = arith.constant 0 : i32
    %c0_i32_0 = arith.constant 0 : i32
    %c0_i32_1 = arith.constant 0 : i32
    return %c0_i32, %c0_i32_0 : i32, i32
  }
  func.func @transform_2(%arg0: i32) -> (i32, i32) {
    %c0_i32 = arith.constant 0 : i32
    %c0_i32_0 = arith.constant 0 : i32
    %c0_i32_1 = arith.constant 0 : i32
    return %c0_i32, %c0_i32_0 : i32, i32
  }
  func.func @transform_3(%arg0: i32) -> (i32, i32) {
    %c0_i32 = arith.constant 0 : i32
    %c0_i32_0 = arith.constant 0 : i32
    return %arg0, %c0_i32 : i32, i32
  }
}

</mosaic_0001>

<llo_original>
// kernel: decoder_forward.5
$region0: #{decoder_forward.5}
  #allocation0 [shape = 'u32[]', space=smem, size = 0x4, offset = 0x4, fixed_abs, tag = 'smem constant byte address 0x4 - core index']
  #allocation1 [shape = 'u32[72,128]{1,0:T(1,128)}', space=vmem, size = 0x9000, scoped, tag = 'internal scratch']
  %s0 = inlined_call_operand.vmem [shape: bf16[16,32], index: 0, kind: input, shape index: {}]
  %s1 = inlined_call_operand.vmem [shape: bf16[32,128], index: 1, kind: input, shape index: {}]
  %s2 = inlined_call_operand.hbm [shape: f32[1,128], index: 2, kind: input, shape index: {}]
  %s3 = inlined_call_operand.vmem [shape: f32[16,128], index: 3, kind: output, shape index: {}]
  %s4 = sld [smem:[#allocation0]]
  $region26: #{decoder_forward.5} parent=0
    _
  %s6 = ssub.s32 1, %s4
  %s7 = scalar_select 0, %s6, %s4
  $region1: #{decoder_forward.5} parent=0
    #allocation2 [shape = 'u8[512]{0}', space=vmem, size = 0x400, scoped, tag = 'input window, operand 2, single buffered']
    #allocation3 [shape = 's32[1]{0}', space=sflag, size = 0x4, scoped, tag = 'scoped memory for decoder_forward.5']
    %8 = vsyncpa [#allocation3], 0
    // Predicated region
    $region2: #{decoder_forward.5} parent=1 // pred_check
      _
    $region3: #{decoder_forward.5} parent=1 // pred_check_branch
      %10 = sbr.rel (0) target = $region5
    $region4: #{decoder_forward.5} parent=1 // pred_region
      _
    $region5: #{decoder_forward.5} parent=1 // pred_fallthru
      _
    // Predicated region
    $region6: #{decoder_forward.5} parent=1 // pred_check
      _
    $region7: #{decoder_forward.5} parent=1 // pred_check_branch
      %12 = sbr.rel (0) target = $region9
    $region8: #{decoder_forward.5} parent=1 // pred_region
      _
    $region9: #{decoder_forward.5} parent=1 // pred_fallthru
      _
    // Predicated region
    $region10: #{decoder_forward.5} parent=1 // pred_check
      _
    $region11: #{decoder_forward.5} parent=1 // pred_check_branch
      %14 = sbr.rel (0) target = $region13
    $region12: #{decoder_forward.5} parent=1 // pred_region
      %16 = vsyncadd [#allocation3], 0
      %s18 = sshll.u32 %s2, 4
      %s19 = int_to_ptr.hbm [resolvable:$true] %s18
      %s20 = sshll.u32 [#allocation2], 4
      %s21 = int_to_ptr.vmem [resolvable:$true] %s20
      %23 = dma.hbm_to_vmem [thread:$0]  %s19, 16, %s21, [#allocation3]
    $region13: #{decoder_forward.5} parent=1 // pred_fallthru
      _
    // Predicated region
    $region14: #{decoder_forward.5} parent=1 // pred_check
      _
    $region15: #{decoder_forward.5} parent=1 // pred_check_branch
      %25 = sbr.rel (0) target = $region17
    $region16: #{decoder_forward.5} parent=1 // pred_region
      %27 = dma.done [#allocation3], 16
    $region17: #{decoder_forward.5} parent=1 // pred_fallthru
      _
    %v29 = vld [vmem:[%s0] sm:$0xf]
    %v30 = vld [vmem:[%s0 + $0x4] sm:$0xf]
    %v31 = vld [vmem:[%s1] sm:$0xf]
    %v32 = vld [vmem:[%s1 + $0x4] sm:$0xf]
    %v33 = vld [vmem:[%s1 + $0x8] sm:$0xf]
    %v34 = vld [vmem:[%s1 + $0xc] sm:$0xf]
    %v35 = vld [vmem:[#allocation2] sm:$0x1]
    %v37 = vperm.slane %v35, 0
    %v41 = vunpack.c.l.b16 %v29
    %v42 = vunpack.c.l.b16 %v30
    %v43 = vpack.c.b16 %v42, %v41
    %v48 = vunpack.c.l.b16 %v31
    %v49 = vunpack.c.l.b16 %v32
    %v50 = vunpack.c.l.b16 %v33
    %v51 = vunpack.c.l.b16 %v34
    %v52 = vpack.c.b16 %v49, %v48
    %v53 = vpack.c.b16 %v51, %v50
    %vm56 = vcmask 261120
    %v58 = vsel %vm56, %v43, 0
    %60 = vmatpush.bf16.msra.mxu0 0
    %61 = vmatpush.bf16.msra.mxu0 0
    %62 = vmatpush.bf16.msra.mxu0 0
    %63 = vmatpush.bf16.msra.mxu0 0
    %64 = vmatpush.bf16.msra.mxu0 0
    %65 = vmatpush.bf16.msra.mxu0 0
    %66 = vmatpush.bf16.msra.mxu0 %v53
    %67 = vmatpush.bf16.msra.mxu0 %v52
    %68 = vmatmul.bf16.gmra.mxu0 %v58
    %v69 = vpop.f32.mrf.mxu0
    %v70 = vadd.f32 %v37, %v69
    %v71 = vpop.f32.mrf.mxu0
    %v72 = vadd.f32 %v37, %v71
    %73 = vdwg.mxu0
    %74 = vst [vmem:[%s3] sm:$0xff] %v70
    %75 = vst [vmem:[%s3 + $0x8] sm:$0xff] %v72
    // Predicated region
    $region18: #{decoder_forward.5} parent=1 // pred_check
      _
    $region19: #{decoder_forward.5} parent=1 // pred_check_branch
      %77 = sbr.rel (0) target = $region21
    $region20: #{decoder_forward.5} parent=1 // pred_region
      _
    $region21: #{decoder_forward.5} parent=1 // pred_fallthru
      _
    // Predicated region
    $region22: #{decoder_forward.5} parent=1 // pred_check
      _
    $region23: #{decoder_forward.5} parent=1 // pred_check_branch
      %79 = sbr.rel (0) target = $region25
    $region24: #{decoder_forward.5} parent=1 // pred_region
      _
    $region25: #{decoder_forward.5} parent=1 // pred_fallthru
      _
    %80 = vsyncpa [#allocation3], 1

// kernel: decoder_forward.6
$region0: #{decoder_forward.6}
  #allocation0 [shape = 'u32[]', space=smem, size = 0x4, offset = 0x4, fixed_abs, tag = 'smem constant byte address 0x4 - core index']
  #allocation1 [shape = 'u32[72,128]{1,0:T(1,128)}', space=vmem, size = 0x9000, scoped, tag = 'internal scratch']
  %s0 = inlined_call_operand.vmem [shape: bf16[16,128], index: 0, kind: input, shape index: {}]
  %s1 = inlined_call_operand.vmem [shape: bf16[128,512], index: 1, kind: input, shape index: {}]
  %s2 = inlined_call_operand.vmem [shape: f32[1,512], index: 2, kind: input, shape index: {}]
  %s3 = inlined_call_operand.vmem [shape: f32[16,512], index: 3, kind: output, shape index: {}]
  %s4 = sld [smem:[#allocation0]]
  $region22: #{decoder_forward.6} parent=0
    _
  %s6 = ssub.s32 1, %s4
  %s7 = scalar_select 0, %s6, %s4
  // Predicated region
  $region2: #{decoder_forward.6} parent=0 // pred_check
    _
  $region3: #{decoder_forward.6} parent=0 // pred_check_branch
    %9 = sbr.rel (0) target = $region5
  $region4: #{decoder_forward.6} parent=0 // pred_region
    _
  $region5: #{decoder_forward.6} parent=0 // pred_fallthru
    _
  // Predicated region
  $region6: #{decoder_forward.6} parent=0 // pred_check
    _
  $region7: #{decoder_forward.6} parent=0 // pred_check_branch
    %11 = sbr.rel (0) target = $region9
  $region8: #{decoder_forward.6} parent=0 // pred_region
    _
  $region9: #{decoder_forward.6} parent=0 // pred_fallthru
    _
  // Predicated region
  $region10: #{decoder_forward.6} parent=0 // pred_check
    _
  $region11: #{decoder_forward.6} parent=0 // pred_check_branch
    %13 = sbr.rel (0) target = $region13
  $region12: #{decoder_forward.6} parent=0 // pred_region
    _
  $region13: #{decoder_forward.6} parent=0 // pred_fallthru
    _
  %v14 = vld [vmem:[%s0] sm:$0xf]
  %v15 = vld [vmem:[%s0 + $0x4] sm:$0xf]
  %v16 = vld [vmem:[%s1] sm:$0xff]
  %v17 = vld [vmem:[%s1 + $0x8] sm:$0xff]
  %v18 = vld [vmem:[%s1 + $0x10] sm:$0xff]
  %v19 = vld [vmem:[%s1 + $0x18] sm:$0xff]
  %v20 = vld [vmem:[%s1 + $0x20] sm:$0xff]
  %v21 = vld [vmem:[%s1 + $0x28] sm:$0xff]
  %v22 = vld [vmem:[%s1 + $0x30] sm:$0xff]
  %v23 = vld [vmem:[%s1 + $0x38] sm:$0xff]
  %v24 = vld [vmem:[%s1 + $0x40] sm:$0xff]
  %v25 = vld [vmem:[%s1 + $0x48] sm:$0xff]
  %v26 = vld [vmem:[%s1 + $0x50] sm:$0xff]
  %v27 = vld [vmem:[%s1 + $0x58] sm:$0xff]
  %v28 = vld [vmem:[%s1 + $0x60] sm:$0xff]
  %v29 = vld [vmem:[%s1 + $0x68] sm:$0xff]
  %v30 = vld [vmem:[%s1 + $0x70] sm:$0xff]
  %v31 = vld [vmem:[%s1 + $0x78] sm:$0xff]
  %v32 = vld [vmem:[%s1 + $0x80] sm:$0xff]
  %v33 = vld [vmem:[%s1 + $0x88] sm:$0xff]
  %v34 = vld [vmem:[%s1 + $0x90] sm:$0xff]
  %v35 = vld [vmem:[%s1 + $0x98] sm:$0xff]
  %v36 = vld [vmem:[%s1 + $0xa0] sm:$0xff]
  %v37 = vld [vmem:[%s1 + $0xa8] sm:$0xff]
  %v38 = vld [vmem:[%s1 + $0xb0] sm:$0xff]
  %v39 = vld [vmem:[%s1 + $0xb8] sm:$0xff]
  %v40 = vld [vmem:[%s1 + $0xc0] sm:$0xff]
  %v41 = vld [vmem:[%s1 + $0xc8] sm:$0xff]
  %v42 = vld [vmem:[%s1 + $0xd0] sm:$0xff]
  %v43 = vld [vmem:[%s1 + $0xd8] sm:$0xff]
  %v44 = vld [vmem:[%s1 + $0xe0] sm:$0xff]
  %v45 = vld [vmem:[%s1 + $0xe8] sm:$0xff]
  %v46 = vld [vmem:[%s1 + $0xf0] sm:$0xff]
  %v47 = vld [vmem:[%s1 + $0xf8] sm:$0xff]
  %v48 = vld [vmem:[%s2] sm:$0xf]
  %v50 = vperm.slane %v48, 0
  %v51 = vperm.slane %v48, 1
  %v52 = vperm.slane %v48, 2
  %v53 = vperm.slane %v48, 3
  %v60 = vunpack.c.l.b16 %v14
  %v61 = vunpack.c.l.b16 %v15
  %v62 = vpack.c.b16 %v61, %v60
  %v96 = vunpack.c.l.b16 %v16
  %v97 = vunpack.c.h.b16 %v16
  %v98 = vunpack.c.l.b16 %v17
  %v99 = vunpack.c.h.b16 %v17
  %v100 = vunpack.c.l.b16 %v18
  %v101 = vunpack.c.h.b16 %v18
  %v102 = vunpack.c.l.b16 %v19
  %v103 = vunpack.c.h.b16 %v19
  %v104 = vunpack.c.l.b16 %v20
  %v105 = vunpack.c.h.b16 %v20
  %v106 = vunpack.c.l.b16 %v21
  %v107 = vunpack.c.h.b16 %v21
  %v108 = vunpack.c.l.b16 %v22
  %v109 = vunpack.c.h.b16 %v22
  %v110 = vunpack.c.l.b16 %v23
  %v111 = vunpack.c.h.b16 %v23
  %v112 = vunpack.c.l.b16 %v24
  %v113 = vunpack.c.h.b16 %v24
  %v114 = vunpack.c.l.b16 %v25
  %v115 = vunpack.c.h.b16 %v25
  %v116 = vunpack.c.l.b16 %v26
  %v117 = vunpack.c.h.b16 %v26
  %v118 = vunpack.c.l.b16 %v27
  %v119 = vunpack.c.h.b16 %v27
  %v120 = vunpack.c.l.b16 %v28
  %v121 = vunpack.c.h.b16 %v28
  %v122 = vunpack.c.l.b16 %v29
  %v123 = vunpack.c.h.b16 %v29
  %v124 = vunpack.c.l.b16 %v30
  %v125 = vunpack.c.h.b16 %v30
  %v126 = vunpack.c.l.b16 %v31
  %v127 = vunpack.c.h.b16 %v31
  %v128 = vunpack.c.l.b16 %v32
  %v129 = vunpack.c.h.b16 %v32
  %v130 = vunpack.c.l.b16 %v33
  %v131 = vunpack.c.h.b16 %v33
  %v132 = vunpack.c.l.b16 %v34
  %v133 = vunpack.c.h.b16 %v34
  %v134 = vunpack.c.l.b16 %v35
  %v135 = vunpack.c.h.b16 %v35
  %v136 = vunpack.c.l.b16 %v36
  %v137 = vunpack.c.h.b16 %v36
  %v138 = vunpack.c.l.b16 %v37
  %v139 = vunpack.c.h.b16 %v37
  %v140 = vunpack.c.l.b16 %v38
  %v141 = vunpack.c.h.b16 %v38
  %v142 = vunpack.c.l.b16 %v39
  %v143 = vunpack.c.h.b16 %v39
  %v144 = vunpack.c.l.b16 %v40
  %v145 = vunpack.c.h.b16 %v40
  %v146 = vunpack.c.l.b16 %v41
  %v147 = vunpack.c.h.b16 %v41
  %v148 = vunpack.c.l.b16 %v42
  %v149 = vunpack.c.h.b16 %v42
  %v150 = vunpack.c.l.b16 %v43
  %v151 = vunpack.c.h.b16 %v43
  %v152 = vunpack.c.l.b16 %v44
  %v153 = vunpack.c.h.b16 %v44
  %v154 = vunpack.c.l.b16 %v45
  %v155 = vunpack.c.h.b16 %v45
  %v156 = vunpack.c.l.b16 %v46
  %v157 = vunpack.c.h.b16 %v46
  %v158 = vunpack.c.l.b16 %v47
  %v159 = vunpack.c.h.b16 %v47
  %v160 = vpack.c.b16 %v100, %v96
  %v161 = vpack.c.b16 %v101, %v97
  %v162 = vpack.c.b16 %v102, %v98
  %v163 = vpack.c.b16 %v103, %v99
  %v164 = vpack.c.b16 %v108, %v104
  %v165 = vpack.c.b16 %v109, %v105
  %v166 = vpack.c.b16 %v110, %v106
  %v167 = vpack.c.b16 %v111, %v107
  %v168 = vpack.c.b16 %v116, %v112
  %v169 = vpack.c.b16 %v117, %v113
  %v170 = vpack.c.b16 %v118, %v114
  %v171 = vpack.c.b16 %v119, %v115
  %v172 = vpack.c.b16 %v124, %v120
  %v173 = vpack.c.b16 %v125, %v121
  %v174 = vpack.c.b16 %v126, %v122
  %v175 = vpack.c.b16 %v127, %v123
  %v176 = vpack.c.b16 %v132, %v128
  %v177 = vpack.c.b16 %v133, %v129
  %v178 = vpack.c.b16 %v134, %v130
  %v179 = vpack.c.b16 %v135, %v131
  %v180 = vpack.c.b16 %v140, %v136
  %v181 = vpack.c.b16 %v141, %v137
  %v182 = vpack.c.b16 %v142, %v138
  %v183 = vpack.c.b16 %v143, %v139
  %v184 = vpack.c.b16 %v148, %v144
  %v185 = vpack.c.b16 %v149, %v145
  %v186 = vpack.c.b16 %v150, %v146
  %v187 = vpack.c.b16 %v151, %v147
  %v188 = vpack.c.b16 %v156, %v152
  %v189 = vpack.c.b16 %v157, %v153
  %v190 = vpack.c.b16 %v158, %v154
  %v191 = vpack.c.b16 %v159, %v155
  %224 = vmatpush.bf16.msra.mxu0 %v188
  %225 = vmatpush.bf16.msra.mxu0 %v184
  %226 = vmatpush.bf16.msra.mxu0 %v180
  %227 = vmatpush.bf16.msra.mxu0 %v176
  %228 = vmatpush.bf16.msra.mxu0 %v172
  %229 = vmatpush.bf16.msra.mxu0 %v168
  %230 = vmatpush.bf16.msra.mxu0 %v164
  %231 = vmatpush.bf16.msra.mxu0 %v160
  %232 = vmatmul.bf16.gmra.mxu0 %v62
  %v233 = vpop.f32.mrf.mxu0
  %v234 = vadd.f32 %v50, %v233
  %v235 = vpop.f32.mrf.mxu0
  %v236 = vadd.f32 %v50, %v235
  %237 = vdwg.mxu0
  %238 = vmatpush.bf16.msra.mxu0 %v189
  %239 = vmatpush.bf16.msra.mxu0 %v185
  %240 = vmatpush.bf16.msra.mxu0 %v181
  %241 = vmatpush.bf16.msra.mxu0 %v177
  %242 = vmatpush.bf16.msra.mxu0 %v173
  %243 = vmatpush.bf16.msra.mxu0 %v169
  %244 = vmatpush.bf16.msra.mxu0 %v165
  %245 = vmatpush.bf16.msra.mxu0 %v161
  %246 = vmatmul.bf16.gmra.mxu0 %v62
  %v247 = vpop.f32.mrf.mxu0
  %v248 = vadd.f32 %v51, %v247
  %v249 = vpop.f32.mrf.mxu0
  %v250 = vadd.f32 %v51, %v249
  %251 = vdwg.mxu0
  %252 = vmatpush.bf16.msra.mxu0 %v190
  %253 = vmatpush.bf16.msra.mxu0 %v186
  %254 = vmatpush.bf16.msra.mxu0 %v182
  %255 = vmatpush.bf16.msra.mxu0 %v178
  %256 = vmatpush.bf16.msra.mxu0 %v174
  %257 = vmatpush.bf16.msra.mxu0 %v170
  %258 = vmatpush.bf16.msra.mxu0 %v166
  %259 = vmatpush.bf16.msra.mxu0 %v162
  %260 = vmatmul.bf16.gmra.mxu0 %v62
  %v261 = vpop.f32.mrf.mxu0
  %v262 = vadd.f32 %v52, %v261
  %v263 = vpop.f32.mrf.mxu0
  %v264 = vadd.f32 %v52, %v263
  %265 = vdwg.mxu0
  %266 = vmatpush.bf16.msra.mxu0 %v191
  %267 = vmatpush.bf16.msra.mxu0 %v187
  %268 = vmatpush.bf16.msra.mxu0 %v183
  %269 = vmatpush.bf16.msra.mxu0 %v179
  %270 = vmatpush.bf16.msra.mxu0 %v175
  %271 = vmatpush.bf16.msra.mxu0 %v171
  %272 = vmatpush.bf16.msra.mxu0 %v167
  %273 = vmatpush.bf16.msra.mxu0 %v163
  %274 = vmatmul.bf16.gmra.mxu0 %v62
  %v275 = vpop.f32.mrf.mxu0
  %v276 = vadd.f32 %v53, %v275
  %v277 = vpop.f32.mrf.mxu0
  %v278 = vadd.f32 %v53, %v277
  %279 = vdwg.mxu0
  %v280 = vmax.f32 %v234, 0.0
  %v281 = vmax.f32 %v248, 0.0
  %v282 = vmax.f32 %v262, 0.0
  %v283 = vmax.f32 %v276, 0.0
  %v284 = vmax.f32 %v236, 0.0
  %v285 = vmax.f32 %v250, 0.0
  %v286 = vmax.f32 %v264, 0.0
  %v287 = vmax.f32 %v278, 0.0
  %288 = vst [vmem:[%s3] sm:$0xff] %v280
  %289 = vst [vmem:[%s3 + $0x8] sm:$0xff] %v281
  %290 = vst [vmem:[%s3 + $0x10] sm:$0xff] %v282
  %291 = vst [vmem:[%s3 + $0x18] sm:$0xff] %v283
  %292 = vst [vmem:[%s3 + $0x20] sm:$0xff] %v284
  %293 = vst [vmem:[%s3 + $0x28] sm:$0xff] %v285
  %294 = vst [vmem:[%s3 + $0x30] sm:$0xff] %v286
  %295 = vst [vmem:[%s3 + $0x38] sm:$0xff] %v287
  // Predicated region
  $region14: #{decoder_forward.6} parent=0 // pred_check
    _
  $region15: #{decoder_forward.6} parent=0 // pred_check_branch
    %297 = sbr.rel (0) target = $region17
  $region16: #{decoder_forward.6} parent=0 // pred_region
    _
  $region17: #{decoder_forward.6} parent=0 // pred_fallthru
    _
  // Predicated region
  $region18: #{decoder_forward.6} parent=0 // pred_check
    _
  $region19: #{decoder_forward.6} parent=0 // pred_check_branch
    %299 = sbr.rel (0) target = $region21
  $region20: #{decoder_forward.6} parent=0 // pred_region
    _
  $region21: #{decoder_forward.6} parent=0 // pred_fallthru
    _

// kernel: decoder_forward.7
$region0: #{decoder_forward.7}
  #allocation0 [shape = 'u32[]', space=smem, size = 0x4, offset = 0x4, fixed_abs, tag = 'smem constant byte address 0x4 - core index']
  #allocation1 [shape = 'u32[72,128]{1,0:T(1,128)}', space=vmem, size = 0x9000, scoped, tag = 'internal scratch']
  %s0 = inlined_call_operand.vmem [shape: bf16[64,16], index: 0, kind: input, shape index: {}]
  %s1 = inlined_call_operand.vmem [shape: bf16[16,256], index: 1, kind: input, shape index: {}]
  %s2 = inlined_call_operand.vmem [shape: f32[1,256], index: 2, kind: input, shape index: {}]
  %s3 = inlined_call_operand.vmem [shape: f32[64,256], index: 3, kind: output, shape index: {}]
  %s4 = sld [smem:[#allocation0]]
  $region22: #{decoder_forward.7} parent=0
    _
  %s6 = ssub.s32 1, %s4
  %s7 = scalar_select 0, %s6, %s4
  // Predicated region
  $region2: #{decoder_forward.7} parent=0 // pred_check
    _
  $region3: #{decoder_forward.7} parent=0 // pred_check_branch
    %9 = sbr.rel (0) target = $region5
  $region4: #{decoder_forward.7} parent=0 // pred_region
    _
  $region5: #{decoder_forward.7} parent=0 // pred_fallthru
    _
  // Predicated region
  $region6: #{decoder_forward.7} parent=0 // pred_check
    _
  $region7: #{decoder_forward.7} parent=0 // pred_check_branch
    %11 = sbr.rel (0) target = $region9
  $region8: #{decoder_forward.7} parent=0 // pred_region
    _
  $region9: #{decoder_forward.7} parent=0 // pred_fallthru
    _
  // Predicated region
  $region10: #{decoder_forward.7} parent=0 // pred_check
    _
  $region11: #{decoder_forward.7} parent=0 // pred_check_branch
    %13 = sbr.rel (0) target = $region13
  $region12: #{decoder_forward.7} parent=0 // pred_region
    _
  $region13: #{decoder_forward.7} parent=0 // pred_fallthru
    _
  %v15 = vld [vmem:[%s0] sm:$0xf]
  %v16 = vld [vmem:[%s0 + $0x4] sm:$0xf]
  %v17 = vld [vmem:[%s0 + $0x8] sm:$0xf]
  %v18 = vld [vmem:[%s0 + $0xc] sm:$0xf]
  %v19 = vld [vmem:[%s0 + $0x10] sm:$0xf]
  %v20 = vld [vmem:[%s0 + $0x14] sm:$0xf]
  %v21 = vld [vmem:[%s0 + $0x18] sm:$0xf]
  %v22 = vld [vmem:[%s0 + $0x1c] sm:$0xf]
  %v23 = vld [vmem:[%s1] sm:$0xff]
  %v24 = vld [vmem:[%s1 + $0x8] sm:$0xff]
  %v25 = vld [vmem:[%s2] sm:$0x3]
  %v27 = vperm.slane %v25, 0
  %v28 = vperm.slane %v25, 1
  %v39 = vunpack.c.l.b16 %v15
  %v40 = vunpack.c.l.b16 %v16
  %v41 = vunpack.c.l.b16 %v17
  %v42 = vunpack.c.l.b16 %v18
  %v43 = vunpack.c.l.b16 %v19
  %v44 = vunpack.c.l.b16 %v20
  %v45 = vunpack.c.l.b16 %v21
  %v46 = vunpack.c.l.b16 %v22
  %v47 = vpack.c.b16 %v40, %v39
  %v48 = vpack.c.b16 %v42, %v41
  %v49 = vpack.c.b16 %v44, %v43
  %v50 = vpack.c.b16 %v46, %v45
  %v53 = vunpack.c.l.b16 %v23
  %v54 = vunpack.c.h.b16 %v23
  %v55 = vunpack.c.l.b16 %v24
  %v56 = vunpack.c.h.b16 %v24
  %v57 = vpack.c.b16 %v55, %v53
  %v58 = vpack.c.b16 %v56, %v54
  %vm61 = vcmask 130048
  %v63 = vsel %vm61, %v47, 0
  %v66 = vsel %vm61, %v48, 0
  %v69 = vsel %vm61, %v49, 0
  %v72 = vsel %vm61, %v50, 0
  %74 = vmatpush.bf16.msra.mxu0 0
  %75 = vmatpush.bf16.msra.mxu0 0
  %76 = vmatpush.bf16.msra.mxu0 0
  %77 = vmatpush.bf16.msra.mxu0 0
  %78 = vmatpush.bf16.msra.mxu0 0
  %79 = vmatpush.bf16.msra.mxu0 0
  %80 = vmatpush.bf16.msra.mxu0 0
  %81 = vmatpush.bf16.msra.mxu0 %v57
  %82 = vmatmul.bf16.gmra.mxu0 %v63
  %v83 = vpop.f32.mrf.mxu0
  %v84 = vadd.f32 %v27, %v83
  %v85 = vpop.f32.mrf.mxu0
  %v86 = vadd.f32 %v27, %v85
  %87 = vmatmul.bf16.gmra.mxu0 %v66
  %v88 = vpop.f32.mrf.mxu0
  %v89 = vadd.f32 %v27, %v88
  %v90 = vpop.f32.mrf.mxu0
  %v91 = vadd.f32 %v27, %v90
  %92 = vmatmul.bf16.gmra.mxu0 %v69
  %v93 = vpop.f32.mrf.mxu0
  %v94 = vadd.f32 %v27, %v93
  %v95 = vpop.f32.mrf.mxu0
  %v96 = vadd.f32 %v27, %v95
  %97 = vmatmul.bf16.gmra.mxu0 %v72
  %v98 = vpop.f32.mrf.mxu0
  %v99 = vadd.f32 %v27, %v98
  %v100 = vpop.f32.mrf.mxu0
  %v101 = vadd.f32 %v27, %v100
  %102 = vdwg.mxu0
  %103 = vmatpush.bf16.msra.mxu0 0
  %104 = vmatpush.bf16.msra.mxu0 0
  %105 = vmatpush.bf16.msra.mxu0 0
  %106 = vmatpush.bf16.msra.mxu0 0
  %107 = vmatpush.bf16.msra.mxu0 0
  %108 = vmatpush.bf16.msra.mxu0 0
  %109 = vmatpush.bf16.msra.mxu0 0
  %110 = vmatpush.bf16.msra.mxu0 %v58
  %111 = vmatmul.bf16.gmra.mxu0 %v63
  %v112 = vpop.f32.mrf.mxu0
  %v113 = vadd.f32 %v28, %v112
  %v114 = vpop.f32.mrf.mxu0
  %v115 = vadd.f32 %v28, %v114
  %116 = vmatmul.bf16.gmra.mxu0 %v66
  %v117 = vpop.f32.mrf.mxu0
  %v118 = vadd.f32 %v28, %v117
  %v119 = vpop.f32.mrf.mxu0
  %v120 = vadd.f32 %v28, %v119
  %121 = vmatmul.bf16.gmra.mxu0 %v69
  %v122 = vpop.f32.mrf.mxu0
  %v123 = vadd.f32 %v28, %v122
  %v124 = vpop.f32.mrf.mxu0
  %v125 = vadd.f32 %v28, %v124
  %126 = vmatmul.bf16.gmra.mxu0 %v72
  %v127 = vpop.f32.mrf.mxu0
  %v128 = vadd.f32 %v28, %v127
  %v129 = vpop.f32.mrf.mxu0
  %v130 = vadd.f32 %v28, %v129
  %131 = vdwg.mxu0
  %132 = vst [vmem:[%s3] sm:$0xff] %v84
  %133 = vst [vmem:[%s3 + $0x8] sm:$0xff] %v113
  %134 = vst [vmem:[%s3 + $0x10] sm:$0xff] %v86
  %135 = vst [vmem:[%s3 + $0x18] sm:$0xff] %v115
  %136 = vst [vmem:[%s3 + $0x20] sm:$0xff] %v89
  %137 = vst [vmem:[%s3 + $0x28] sm:$0xff] %v118
  %138 = vst [vmem:[%s3 + $0x30] sm:$0xff] %v91
  %139 = vst [vmem:[%s3 + $0x38] sm:$0xff] %v120
  %140 = vst [vmem:[%s3 + $0x40] sm:$0xff] %v94
  %141 = vst [vmem:[%s3 + $0x48] sm:$0xff] %v123
  %142 = vst [vmem:[%s3 + $0x50] sm:$0xff] %v96
  %143 = vst [vmem:[%s3 + $0x58] sm:$0xff] %v125
  %144 = vst [vmem:[%s3 + $0x60] sm:$0xff] %v99
  %145 = vst [vmem:[%s3 + $0x68] sm:$0xff] %v128
  %146 = vst [vmem:[%s3 + $0x70] sm:$0xff] %v101
  %147 = vst [vmem:[%s3 + $0x78] sm:$0xff] %v130
  // Predicated region
  $region14: #{decoder_forward.7} parent=0 // pred_check
    _
  $region15: #{decoder_forward.7} parent=0 // pred_check_branch
    %149 = sbr.rel (0) target = $region17
  $region16: #{decoder_forward.7} parent=0 // pred_region
    _
  $region17: #{decoder_forward.7} parent=0 // pred_fallthru
    _
  // Predicated region
  $region18: #{decoder_forward.7} parent=0 // pred_check
    _
  $region19: #{decoder_forward.7} parent=0 // pred_check_branch
    %151 = sbr.rel (0) target = $region21
  $region20: #{decoder_forward.7} parent=0 // pred_region
    _
  $region21: #{decoder_forward.7} parent=0 // pred_fallthru
    _

// kernel: decoder_forward.8
$region0: #{decoder_forward.8}
  #allocation0 [shape = 'u32[]', space=smem, size = 0x4, offset = 0x4, fixed_abs, tag = 'smem constant byte address 0x4 - core index']
  #allocation1 [shape = 'u32[72,128]{1,0:T(1,128)}', space=vmem, size = 0x9000, scoped, tag = 'internal scratch']
  %s0 = inlined_call_operand.vmem [shape: bf16[352,8], index: 0, kind: input, shape index: {}]
  %s1 = inlined_call_operand.vmem [shape: bf16[8,256], index: 1, kind: input, shape index: {}]
  %s2 = inlined_call_operand.vmem [shape: f32[1,256], index: 2, kind: input, shape index: {}]
  %s3 = inlined_call_operand.vmem [shape: f32[352,256], index: 3, kind: output, shape index: {}]
  %s4 = sld [smem:[#allocation0]]
  $region45: #{decoder_forward.8} parent=0
    _
  %s6 = ssub.s32 1, %s4
  %s7 = scalar_select 0, %s6, %s4
  loop: start=0, step=1, limit=4
  $region2: #{decoder_forward.8} parent=0 // loop_pre_header
    _
  $region3: #{decoder_forward.8} parent=0 // loop_header
    %s9 = sphi 0, %s13
    %p10 = scmp.ge.s32.totalorder %s9, 4
    %s19 = sphi 0, %s21
    %s22 = sphi 0, %s19
    %s23 = sphi 0, %s22
    %s39 = sphi 0, %s23
    %s43 = sphi 0, %s43
    %s45 = sphi 0, %s43
    %s46 = sphi 0, %s45
    %s60 = sphi 0, %s46
    %s64 = sphi 0, %s64
    %s66 = sphi 0, %s64
    %s67 = sphi 0, %s66
    %s81 = sphi 0, %s67
    %s87 = sphi 0, %s89
    %s90 = sphi 0, %s87
    %s91 = sphi 0, %s90
    %s107 = sphi 0, %s91
  $region4: #{decoder_forward.8} parent=0 // loop_header_branch
    %12 = sbr.rel (%p10) target = $region8
  $region5: #{decoder_forward.8} parent=0 // loop_body
    %s14 = ssub.s32 %s9, 1
    %s15 = ssub.s32 %s9, 2
    %s16 = sadd.s32 %s9, 1
    %s17 = ssub.s32 %s9, %s16
    %p18 = scmp.eq.s32.totalorder %s17, 0
    %s20 = sadd.s32 %s19, 1
    %s21 = scalar_select %p18, %s19, %s20
    %p24 = pneg %p18
    %p25 = scmp.eq.s32.totalorder %s9, 1
    %p26 = por %p24, %p25
    %p27 = scmp.ne.s32.totalorder %s19, %s22
    %p28 = scmp.eq.s32.totalorder %s9, 0
    %p29 = por %p27, %p28
    %p30 = scmp.ne.s32.totalorder %s19, %s22
    %p31 = scmp.eq.s32.totalorder %s14, 1
    %p32 = por %p30, %p31
    %p33 = scmp.ne.s32.totalorder %s22, %s23
    %p34 = scmp.eq.s32.totalorder %s14, 0
    %p35 = por %p33, %p34
    %p36 = scmp.ne.s32.totalorder %s22, %s23
    %p37 = scmp.eq.s32.totalorder %s15, 1
    %p38 = por %p36, %p37
    %p40 = scmp.ne.s32.totalorder %s23, %s39
    %p41 = scmp.eq.s32.totalorder %s15, 0
    %p42 = por %p40, %p41
    %s44 = sadd.s32 %s43, 1
    %p47 = scmp.eq.s32.totalorder %s9, 1
    %p48 = scmp.ne.s32.totalorder %s43, %s45
    %p49 = scmp.eq.s32.totalorder %s9, 0
    %p50 = por %p48, %p49
    %p51 = scmp.ne.s32.totalorder %s43, %s45
    %p52 = scmp.eq.s32.totalorder %s14, 1
    %p53 = por %p51, %p52
    %p54 = scmp.ne.s32.totalorder %s45, %s46
    %p55 = scmp.eq.s32.totalorder %s14, 0
    %p56 = por %p54, %p55
    %p57 = scmp.ne.s32.totalorder %s45, %s46
    %p58 = scmp.eq.s32.totalorder %s15, 1
    %p59 = por %p57, %p58
    %p61 = scmp.ne.s32.totalorder %s46, %s60
    %p62 = scmp.eq.s32.totalorder %s15, 0
    %p63 = por %p61, %p62
    %s65 = sadd.s32 %s64, 1
    %p68 = scmp.eq.s32.totalorder %s9, 1
    %p69 = scmp.ne.s32.totalorder %s64, %s66
    %p70 = scmp.eq.s32.totalorder %s9, 0
    %p71 = por %p69, %p70
    %p72 = scmp.ne.s32.totalorder %s64, %s66
    %p73 = scmp.eq.s32.totalorder %s14, 1
    %p74 = por %p72, %p73
    %p75 = scmp.ne.s32.totalorder %s66, %s67
    %p76 = scmp.eq.s32.totalorder %s14, 0
    %p77 = por %p75, %p76
    %p78 = scmp.ne.s32.totalorder %s66, %s67
    %p79 = scmp.eq.s32.totalorder %s15, 1
    %p80 = por %p78, %p79
    %p82 = scmp.ne.s32.totalorder %s67, %s81
    %p83 = scmp.eq.s32.totalorder %s15, 0
    %p84 = por %p82, %p83
    %s85 = ssub.s32 %s9, %s16
    %p86 = scmp.eq.s32.totalorder %s85, 0
    %s88 = sadd.s32 %s87, 1
    %s89 = scalar_select %p86, %s87, %s88
    %p92 = pneg %p86
    %p93 = scmp.eq.s32.totalorder %s9, 1
    %p94 = por %p92, %p93
    %p95 = scmp.ne.s32.totalorder %s87, %s90
    %p96 = scmp.eq.s32.totalorder %s9, 0
    %p97 = por %p95, %p96
    %p98 = scmp.ne.s32.totalorder %s87, %s90
    %p99 = scmp.eq.s32.totalorder %s14, 1
    %p100 = por %p98, %p99
    %p101 = scmp.ne.s32.totalorder %s90, %s91
    %p102 = scmp.eq.s32.totalorder %s14, 0
    %p103 = por %p101, %p102
    %p104 = scmp.ne.s32.totalorder %s90, %s91
    %p105 = scmp.eq.s32.totalorder %s15, 1
    %p106 = por %p104, %p105
    %p108 = scmp.ne.s32.totalorder %s91, %s107
    %p109 = scmp.eq.s32.totalorder %s15, 0
    %p110 = por %p108, %p109
    %p111 = scmp.le.s32.totalorder 1, %s9
    %p112 = scmp.lt.s32.totalorder %s9, 3
    %p113 = pnand %p111, %p112
    %p114 = pneg %p113
    // Predicated region
    $region9: #{decoder_forward.8} parent=5 // pred_check
      _
    $region10: #{decoder_forward.8} parent=5 // pred_check_branch
      %116 = sbr.rel (%p113) target = $region12
    $region11: #{decoder_forward.8} parent=5 // pred_region
      %s117 = ssub.s32 %s9, 1
      // Predicated region
      $region13: #{decoder_forward.8} parent=11 // pred_check
        %p118 = pneg %p56
      $region14: #{decoder_forward.8} parent=11 // pred_check_branch
        %120 = sbr.rel (%p118) target = $region16
      $region15: #{decoder_forward.8} parent=11 // pred_region
        _
      $region16: #{decoder_forward.8} parent=11 // pred_fallthru
        _
      // Predicated region
      $region17: #{decoder_forward.8} parent=11 // pred_check
        %p121 = pneg %p77
      $region18: #{decoder_forward.8} parent=11 // pred_check_branch
        %123 = sbr.rel (%p121) target = $region20
      $region19: #{decoder_forward.8} parent=11 // pred_region
        _
      $region20: #{decoder_forward.8} parent=11 // pred_fallthru
        _
    $region12: #{decoder_forward.8} parent=5 // pred_fallthru
      _
    %p124 = scmp.lt.s32.totalorder %s9, 2
    // Predicated region
    $region21: #{decoder_forward.8} parent=5 // pred_check
      %p125 = pneg %p124
    $region22: #{decoder_forward.8} parent=5 // pred_check_branch
      %127 = sbr.rel (%p125) target = $region24
    $region23: #{decoder_forward.8} parent=5 // pred_region
      // Predicated region
      $region25: #{decoder_forward.8} parent=23 // pred_check
        %p128 = pneg %p29
      $region26: #{decoder_forward.8} parent=23 // pred_check_branch
        %130 = sbr.rel (%p128) target = $region28
      $region27: #{decoder_forward.8} parent=23 // pred_region
        %s131 = smul.u32 22, %s9
        %p132 = scmp.lt.s32.totalorder %s131, 43
        %s133 = scalar_select %p132, %s131, 43
        %s134 = smul.addr %s133, 4
        %s135 = scalar_lea.vmem %s0, %s134
        %s136 = smul.u32 22, %s9
      $region28: #{decoder_forward.8} parent=23 // pred_fallthru
        _
    $region24: #{decoder_forward.8} parent=5 // pred_fallthru
      _
    %p137 = scmp.le.s32.totalorder 1, %s9
    %p138 = scmp.lt.s32.totalorder %s9, 3
    %p139 = pnand %p137, %p138
    %p140 = pneg %p139
    // Predicated region
    $region29: #{decoder_forward.8} parent=5 // pred_check
      _
    $region30: #{decoder_forward.8} parent=5 // pred_check_branch
      %142 = sbr.rel (%p139) target = $region32
    $region31: #{decoder_forward.8} parent=5 // pred_region
      %s143 = ssub.s32 %s9, 1
      %s144 = smul.u32 22, %s14
      %p145 = scmp.lt.s32.totalorder %s144, 43
      %s146 = scalar_select %p145, %s144, 43
      %s147 = smul.addr %s146, 4
      %s148 = scalar_lea.vmem %s0, %s147
      %p149 = pneg %p35
      %p150 = pneg %p32
      %p151 = pneg %p56
      %p152 = pneg %p53
      %p153 = pneg %p77
      %p154 = pneg %p74
      %p155 = pneg %p103
      %p156 = pneg %p100
      %s157 = smul.u32 22, %s14
      %p158 = scmp.lt.s32.totalorder %s157, 43
      %s159 = scalar_select %p158, %s157, 43
      %s160 = smul.addr %s159, 2
      %s161 = smul.addr %s160, 8
      %s162 = scalar_lea.vmem %s3, %s161
      %s163 = smul.u32 22, %s14
      %p164 = scmp.lt.s32.totalorder %s163, 43
      %s165 = scalar_select %p164, %s163, 43
      %s166 = smul.addr %s165, 4
      %s167 = scalar_lea.vmem %s0, %s166
      %s168 = smul.u32 22, %s14
      %s169 = smul.u32 22, %s14
      %p170 = scmp.lt.s32.totalorder %s169, 43
      %s171 = scalar_select %p170, %s169, 43
      %s172 = smul.addr %s171, 2
      %s173 = smul.addr %s172, 8
      %s174 = scalar_lea.vmem %s3, %s173
      %s175 = smul.u32 22, %s14
      %v177 = vld [vmem:[%s167] sm:$0xf]
      %v178 = vld [vmem:[%s167 + $0x4] sm:$0xf]
      %v179 = vld [vmem:[%s167 + $0x8] sm:$0xf]
      %v180 = vld [vmem:[%s167 + $0xc] sm:$0xf]
      %v181 = vld [vmem:[%s167 + $0x10] sm:$0xf]
      %v182 = vld [vmem:[%s167 + $0x14] sm:$0xf]
      %v183 = vld [vmem:[%s167 + $0x18] sm:$0xf]
      %v184 = vld [vmem:[%s167 + $0x1c] sm:$0xf]
      %v185 = vld [vmem:[%s167 + $0x20] sm:$0xf]
      %v186 = vld [vmem:[%s167 + $0x24] sm:$0xf]
      %v187 = vld [vmem:[%s167 + $0x28] sm:$0xf]
      %v188 = vld [vmem:[%s167 + $0x2c] sm:$0xf]
      %v189 = vld [vmem:[%s167 + $0x30] sm:$0xf]
      %v190 = vld [vmem:[%s167 + $0x34] sm:$0xf]
      %v191 = vld [vmem:[%s167 + $0x38] sm:$0xf]
      %v192 = vld [vmem:[%s167 + $0x3c] sm:$0xf]
      %v193 = vld [vmem:[%s167 + $0x40] sm:$0xf]
      %v194 = vld [vmem:[%s167 + $0x44] sm:$0xf]
      %v195 = vld [vmem:[%s167 + $0x48] sm:$0xf]
      %v196 = vld [vmem:[%s167 + $0x4c] sm:$0xf]
      %v197 = vld [vmem:[%s167 + $0x50] sm:$0xf]
      %v198 = vld [vmem:[%s167 + $0x54] sm:$0xf]
      %v199 = vld [vmem:[%s1] sm:$0xff]
      %v200 = vld [vmem:[%s2] sm:$0x3]
      %v202 = vperm.slane %v200, 0
      %v203 = vperm.slane %v200, 1
      %v228 = vunpack.c.l.b16 %v177
      %v229 = vunpack.c.l.b16 %v178
      %v230 = vunpack.c.l.b16 %v179
      %v231 = vunpack.c.l.b16 %v180
      %v232 = vunpack.c.l.b16 %v181
      %v233 = vunpack.c.l.b16 %v182
      %v234 = vunpack.c.l.b16 %v183
      %v235 = vunpack.c.l.b16 %v184
      %v236 = vunpack.c.l.b16 %v185
      %v237 = vunpack.c.l.b16 %v186
      %v238 = vunpack.c.l.b16 %v187
      %v239 = vunpack.c.l.b16 %v188
      %v240 = vunpack.c.l.b16 %v189
      %v241 = vunpack.c.l.b16 %v190
      %v242 = vunpack.c.l.b16 %v191
      %v243 = vunpack.c.l.b16 %v192
      %v244 = vunpack.c.l.b16 %v193
      %v245 = vunpack.c.l.b16 %v194
      %v246 = vunpack.c.l.b16 %v195
      %v247 = vunpack.c.l.b16 %v196
      %v248 = vunpack.c.l.b16 %v197
      %v249 = vunpack.c.l.b16 %v198
      %v250 = vpack.c.b16 %v229, %v228
      %v251 = vpack.c.b16 %v231, %v230
      %v252 = vpack.c.b16 %v233, %v232
      %v253 = vpack.c.b16 %v235, %v234
      %v254 = vpack.c.b16 %v237, %v236
      %v255 = vpack.c.b16 %v239, %v238
      %v256 = vpack.c.b16 %v241, %v240
      %v257 = vpack.c.b16 %v243, %v242
      %v258 = vpack.c.b16 %v245, %v244
      %v259 = vpack.c.b16 %v247, %v246
      %v260 = vpack.c.b16 %v249, %v248
      %v262 = vunpack.c.l.b16 %v199
      %v263 = vunpack.c.h.b16 %v199
      %v264 = vpack.c.b16 %v262, %v262
      %v265 = vpack.c.b16 %v263, %v263
      %vm266 = vcmask 64512
      %v268 = vsel %vm266, %v250, 0
      %v271 = vsel %vm266, %v251, 0
      %v274 = vsel %vm266, %v252, 0
      %v277 = vsel %vm266, %v253, 0
      %v280 = vsel %vm266, %v254, 0
      %v283 = vsel %vm266, %v255, 0
      %v286 = vsel %vm266, %v256, 0
      %v289 = vsel %vm266, %v257, 0
      %v292 = vsel %vm266, %v258, 0
      %v295 = vsel %vm266, %v259, 0
      %v298 = vsel %vm266, %v260, 0
      %vm300 = vcmask 1043456
      %v302 = vsel %vm300, %v264, 0
      %v305 = vsel %vm300, %v265, 0
      %307 = vmatpush.bf16.msra.mxu0 0
      %308 = vmatpush.bf16.msra.mxu0 0
      %309 = vmatpush.bf16.msra.mxu0 0
      %310 = vmatpush.bf16.msra.mxu0 0
      %311 = vmatpush.bf16.msra.mxu0 0
      %312 = vmatpush.bf16.msra.mxu0 0
      %313 = vmatpush.bf16.msra.mxu0 0
      %314 = vmatpush.bf16.msra.mxu0 %v302
      %315 = vmatmul.bf16.gmra.mxu0 %v268
      %v316 = vpop.f32.mrf.mxu0
      %v317 = vadd.f32 %v202, %v316
      %v318 = vpop.f32.mrf.mxu0
      %v319 = vadd.f32 %v202, %v318
      %320 = vmatmul.bf16.gmra.mxu0 %v271
      %v321 = vpop.f32.mrf.mxu0
      %v322 = vadd.f32 %v202, %v321
      %v323 = vpop.f32.mrf.mxu0
      %v324 = vadd.f32 %v202, %v323
      %325 = vmatmul.bf16.gmra.mxu0 %v274
      %v326 = vpop.f32.mrf.mxu0
      %v327 = vadd.f32 %v202, %v326
      %v328 = vpop.f32.mrf.mxu0
      %v329 = vadd.f32 %v202, %v328
      %330 = vmatmul.bf16.gmra.mxu0 %v277
      %v331 = vpop.f32.mrf.mxu0
      %v332 = vadd.f32 %v202, %v331
      %v333 = vpop.f32.mrf.mxu0
      %v334 = vadd.f32 %v202, %v333
      %335 = vmatmul.bf16.gmra.mxu0 %v280
      %v336 = vpop.f32.mrf.mxu0
      %v337 = vadd.f32 %v202, %v336
      %v338 = vpop.f32.mrf.mxu0
      %v339 = vadd.f32 %v202, %v338
      %340 = vmatmul.bf16.gmra.mxu0 %v283
      %v341 = vpop.f32.mrf.mxu0
      %v342 = vadd.f32 %v202, %v341
      %v343 = vpop.f32.mrf.mxu0
      %v344 = vadd.f32 %v202, %v343
      %345 = vmatmul.bf16.gmra.mxu0 %v286
      %v346 = vpop.f32.mrf.mxu0
      %v347 = vadd.f32 %v202, %v346
      %v348 = vpop.f32.mrf.mxu0
      %v349 = vadd.f32 %v202, %v348
      %350 = vmatmul.bf16.gmra.mxu0 %v289
      %v351 = vpop.f32.mrf.mxu0
      %v352 = vadd.f32 %v202, %v351
      %v353 = vpop.f32.mrf.mxu0
      %v354 = vadd.f32 %v202, %v353
      %355 = vmatmul.bf16.gmra.mxu0 %v292
      %v356 = vpop.f32.mrf.mxu0
      %v357 = vadd.f32 %v202, %v356
      %v358 = vpop.f32.mrf.mxu0
      %v359 = vadd.f32 %v202, %v358
      %360 = vmatmul.bf16.gmra.mxu0 %v295
      %v361 = vpop.f32.mrf.mxu0
      %v362 = vadd.f32 %v202, %v361
      %v363 = vpop.f32.mrf.mxu0
      %v364 = vadd.f32 %v202, %v363
      %365 = vmatmul.bf16.gmra.mxu0 %v298
      %v366 = vpop.f32.mrf.mxu0
      %v367 = vadd.f32 %v202, %v366
      %v368 = vpop.f32.mrf.mxu0
      %v369 = vadd.f32 %v202, %v368
      %370 = vdwg.mxu0
      %371 = vmatpush.bf16.msra.mxu0 0
      %372 = vmatpush.bf16.msra.mxu0 0
      %373 = vmatpush.bf16.msra.mxu0 0
      %374 = vmatpush.bf16.msra.mxu0 0
      %375 = vmatpush.bf16.msra.mxu0 0
      %376 = vmatpush.bf16.msra.mxu0 0
      %377 = vmatpush.bf16.msra.mxu0 0
      %378 = vmatpush.bf16.msra.mxu0 %v305
      %379 = vmatmul.bf16.gmra.mxu0 %v268
      %v380 = vpop.f32.mrf.mxu0
      %v381 = vadd.f32 %v203, %v380
      %v382 = vpop.f32.mrf.mxu0
      %v383 = vadd.f32 %v203, %v382
      %384 = vmatmul.bf16.gmra.mxu0 %v271
      %v385 = vpop.f32.mrf.mxu0
      %v386 = vadd.f32 %v203, %v385
      %v387 = vpop.f32.mrf.mxu0
      %v388 = vadd.f32 %v203, %v387
      %389 = vmatmul.bf16.gmra.mxu0 %v274
      %v390 = vpop.f32.mrf.mxu0
      %v391 = vadd.f32 %v203, %v390
      %v392 = vpop.f32.mrf.mxu0
      %v393 = vadd.f32 %v203, %v392
      %394 = vmatmul.bf16.gmra.mxu0 %v277
      %v395 = vpop.f32.mrf.mxu0
      %v396 = vadd.f32 %v203, %v395
      %v397 = vpop.f32.mrf.mxu0
      %v398 = vadd.f32 %v203, %v397
      %399 = vmatmul.bf16.gmra.mxu0 %v280
      %v400 = vpop.f32.mrf.mxu0
      %v401 = vadd.f32 %v203, %v400
      %v402 = vpop.f32.mrf.mxu0
      %v403 = vadd.f32 %v203, %v402
      %404 = vmatmul.bf16.gmra.mxu0 %v283
      %v405 = vpop.f32.mrf.mxu0
      %v406 = vadd.f32 %v203, %v405
      %v407 = vpop.f32.mrf.mxu0
      %v408 = vadd.f32 %v203, %v407
      %409 = vmatmul.bf16.gmra.mxu0 %v286
      %v410 = vpop.f32.mrf.mxu0
      %v411 = vadd.f32 %v203, %v410
      %v412 = vpop.f32.mrf.mxu0
      %v413 = vadd.f32 %v203, %v412
      %414 = vmatmul.bf16.gmra.mxu0 %v289
      %v415 = vpop.f32.mrf.mxu0
      %v416 = vadd.f32 %v203, %v415
      %v417 = vpop.f32.mrf.mxu0
      %v418 = vadd.f32 %v203, %v417
      %419 = vmatmul.bf16.gmra.mxu0 %v292
      %v420 = vpop.f32.mrf.mxu0
      %v421 = vadd.f32 %v203, %v420
      %v422 = vpop.f32.mrf.mxu0
      %v423 = vadd.f32 %v203, %v422
      %424 = vmatmul.bf16.gmra.mxu0 %v295
      %v425 = vpop.f32.mrf.mxu0
      %v426 = vadd.f32 %v203, %v425
      %v427 = vpop.f32.mrf.mxu0
      %v428 = vadd.f32 %v203, %v427
      %429 = vmatmul.bf16.gmra.mxu0 %v298
      %v430 = vpop.f32.mrf.mxu0
      %v431 = vadd.f32 %v203, %v430
      %v432 = vpop.f32.mrf.mxu0
      %v433 = vadd.f32 %v203, %v432
      %434 = vdwg.mxu0
      %435 = vst [vmem:[%s174] sm:$0xff] %v317
      %436 = vst [vmem:[%s174 + $0x8] sm:$0xff] %v381
      %437 = vst [vmem:[%s174 + $0x10] sm:$0xff] %v319
      %438 = vst [vmem:[%s174 + $0x18] sm:$0xff] %v383
      %439 = vst [vmem:[%s174 + $0x20] sm:$0xff] %v322
      %440 = vst [vmem:[%s174 + $0x28] sm:$0xff] %v386
      %441 = vst [vmem:[%s174 + $0x30] sm:$0xff] %v324
      %442 = vst [vmem:[%s174 + $0x38] sm:$0xff] %v388
      %443 = vst [vmem:[%s174 + $0x40] sm:$0xff] %v327
      %444 = vst [vmem:[%s174 + $0x48] sm:$0xff] %v391
      %445 = vst [vmem:[%s174 + $0x50] sm:$0xff] %v329
      %446 = vst [vmem:[%s174 + $0x58] sm:$0xff] %v393
      %447 = vst [vmem:[%s174 + $0x60] sm:$0xff] %v332
      %448 = vst [vmem:[%s174 + $0x68] sm:$0xff] %v396
      %449 = vst [vmem:[%s174 + $0x70] sm:$0xff] %v334
      %450 = vst [vmem:[%s174 + $0x78] sm:$0xff] %v398
      %451 = vst [vmem:[%s174 + $0x80] sm:$0xff] %v337
      %452 = vst [vmem:[%s174 + $0x88] sm:$0xff] %v401
      %453 = vst [vmem:[%s174 + $0x90] sm:$0xff] %v339
      %454 = vst [vmem:[%s174 + $0x98] sm:$0xff] %v403
      %455 = vst [vmem:[%s174 + $0xa0] sm:$0xff] %v342
      %456 = vst [vmem:[%s174 + $0xa8] sm:$0xff] %v406
      %457 = vst [vmem:[%s174 + $0xb0] sm:$0xff] %v344
      %458 = vst [vmem:[%s174 + $0xb8] sm:$0xff] %v408
      %459 = vst [vmem:[%s174 + $0xc0] sm:$0xff] %v347
      %460 = vst [vmem:[%s174 + $0xc8] sm:$0xff] %v411
      %461 = vst [vmem:[%s174 + $0xd0] sm:$0xff] %v349
      %462 = vst [vmem:[%s174 + $0xd8] sm:$0xff] %v413
      %463 = vst [vmem:[%s174 + $0xe0] sm:$0xff] %v352
      %464 = vst [vmem:[%s174 + $0xe8] sm:$0xff] %v416
      %465 = vst [vmem:[%s174 + $0xf0] sm:$0xff] %v354
      %466 = vst [vmem:[%s174 + $0xf8] sm:$0xff] %v418
      %467 = vst [vmem:[%s174 + $0x100] sm:$0xff] %v357
      %468 = vst [vmem:[%s174 + $0x108] sm:$0xff] %v421
      %469 = vst [vmem:[%s174 + $0x110] sm:$0xff] %v359
      %470 = vst [vmem:[%s174 + $0x118] sm:$0xff] %v423
      %471 = vst [vmem:[%s174 + $0x120] sm:$0xff] %v362
      %472 = vst [vmem:[%s174 + $0x128] sm:$0xff] %v426
      %473 = vst [vmem:[%s174 + $0x130] sm:$0xff] %v364
      %474 = vst [vmem:[%s174 + $0x138] sm:$0xff] %v428
      %475 = vst [vmem:[%s174 + $0x140] sm:$0xff] %v367
      %476 = vst [vmem:[%s174 + $0x148] sm:$0xff] %v431
      %477 = vst [vmem:[%s174 + $0x150] sm:$0xff] %v369
      %478 = vst [vmem:[%s174 + $0x158] sm:$0xff] %v433
      %s479 = smul.u32 22, %s14
      %p480 = scmp.lt.s32.totalorder %s479, 43
      %s481 = scalar_select %p480, %s479, 43
      %s482 = smul.addr %s481, 2
      %s483 = smul.addr %s482, 8
      %s484 = scalar_lea.vmem %s3, %s483
      // Predicated region
      $region33: #{decoder_forward.8} parent=31 // pred_check
        %p485 = pneg %p100
      $region34: #{decoder_forward.8} parent=31 // pred_check_branch
        %487 = sbr.rel (%p485) target = $region36
      $region35: #{decoder_forward.8} parent=31 // pred_region
        %s488 = smul.u32 22, %s14
      $region36: #{decoder_forward.8} parent=31 // pred_fallthru
        _
    $region32: #{decoder_forward.8} parent=5 // pred_fallthru
      _
    %p489 = scmp.le.s32.totalorder 2, %s9
    // Predicated region
    $region37: #{decoder_forward.8} parent=5 // pred_check
      %p490 = pneg %p489
    $region38: #{decoder_forward.8} parent=5 // pred_check_branch
      %492 = sbr.rel (%p490) target = $region40
    $region39: #{decoder_forward.8} parent=5 // pred_region
      %s493 = ssub.s32 %s9, 2
      // Predicated region
      $region41: #{decoder_forward.8} parent=39 // pred_check
        %p494 = pneg %p106
      $region42: #{decoder_forward.8} parent=39 // pred_check_branch
        %496 = sbr.rel (%p494) target = $region44
      $region43: #{decoder_forward.8} parent=39 // pred_region
        %s497 = smul.u32 22, %s15
        %p498 = scmp.lt.s32.totalorder %s497, 43
        %s499 = scalar_select %p498, %s497, 43
        %s500 = smul.addr %s499, 2
        %s501 = smul.addr %s500, 8
        %s502 = scalar_lea.vmem %s3, %s501
      $region44: #{decoder_forward.8} parent=39 // pred_fallthru
        _
    $region40: #{decoder_forward.8} parent=5 // pred_fallthru
      _
  $region6: #{decoder_forward.8} parent=0 // loop_footer
    %s13 = sadd.s32 1, %s9
  $region7: #{decoder_forward.8} parent=0 // loop_footer_branch
    %8 = sbr.rel target = $region3
  $region8: #{decoder_forward.8} parent=0 // loop_exit
    _

// kernel: decoder_forward.9
$region0: #{decoder_forward.9}
  #allocation0 [shape = 'u32[]', space=smem, size = 0x4, offset = 0x4, fixed_abs, tag = 'smem constant byte address 0x4 - core index']
  #allocation1 [shape = 'u32[72,128]{1,0:T(1,128)}', space=vmem, size = 0x9000, scoped, tag = 'internal scratch']
  %s0 = inlined_call_operand.vmem [shape: bf16[1856,8], index: 0, kind: input, shape index: {}]
  %s1 = inlined_call_operand.vmem [shape: bf16[8,128], index: 1, kind: input, shape index: {}]
  %s2 = inlined_call_operand.vmem [shape: f32[1,128], index: 2, kind: input, shape index: {}]
  %s3 = inlined_call_operand.vmem [shape: f32[1856,128], index: 3, kind: output, shape index: {}]
  %s4 = sld [smem:[#allocation0]]
  $region45: #{decoder_forward.9} parent=0
    _
  %s6 = ssub.s32 1, %s4
  %s7 = scalar_select 0, %s6, %s4
  loop: start=0, step=1, limit=6
  $region2: #{decoder_forward.9} parent=0 // loop_pre_header
    _
  $region3: #{decoder_forward.9} parent=0 // loop_header
    %s9 = sphi 0, %s13
    %p10 = scmp.ge.s32.totalorder %s9, 6
    %s19 = sphi 0, %s21
    %s22 = sphi 0, %s19
    %s23 = sphi 0, %s22
    %s39 = sphi 0, %s23
    %s43 = sphi 0, %s43
    %s45 = sphi 0, %s43
    %s46 = sphi 0, %s45
    %s60 = sphi 0, %s46
    %s64 = sphi 0, %s64
    %s66 = sphi 0, %s64
    %s67 = sphi 0, %s66
    %s81 = sphi 0, %s67
    %s87 = sphi 0, %s89
    %s90 = sphi 0, %s87
    %s91 = sphi 0, %s90
    %s107 = sphi 0, %s91
  $region4: #{decoder_forward.9} parent=0 // loop_header_branch
    %12 = sbr.rel (%p10) target = $region8
  $region5: #{decoder_forward.9} parent=0 // loop_body
    %s14 = ssub.s32 %s9, 1
    %s15 = ssub.s32 %s9, 2
    %s16 = sadd.s32 %s9, 1
    %s17 = ssub.s32 %s9, %s16
    %p18 = scmp.eq.s32.totalorder %s17, 0
    %s20 = sadd.s32 %s19, 1
    %s21 = scalar_select %p18, %s19, %s20
    %p24 = pneg %p18
    %p25 = scmp.eq.s32.totalorder %s9, 3
    %p26 = por %p24, %p25
    %p27 = scmp.ne.s32.totalorder %s19, %s22
    %p28 = scmp.eq.s32.totalorder %s9, 0
    %p29 = por %p27, %p28
    %p30 = scmp.ne.s32.totalorder %s19, %s22
    %p31 = scmp.eq.s32.totalorder %s14, 3
    %p32 = por %p30, %p31
    %p33 = scmp.ne.s32.totalorder %s22, %s23
    %p34 = scmp.eq.s32.totalorder %s14, 0
    %p35 = por %p33, %p34
    %p36 = scmp.ne.s32.totalorder %s22, %s23
    %p37 = scmp.eq.s32.totalorder %s15, 3
    %p38 = por %p36, %p37
    %p40 = scmp.ne.s32.totalorder %s23, %s39
    %p41 = scmp.eq.s32.totalorder %s15, 0
    %p42 = por %p40, %p41
    %s44 = sadd.s32 %s43, 1
    %p47 = scmp.eq.s32.totalorder %s9, 3
    %p48 = scmp.ne.s32.totalorder %s43, %s45
    %p49 = scmp.eq.s32.totalorder %s9, 0
    %p50 = por %p48, %p49
    %p51 = scmp.ne.s32.totalorder %s43, %s45
    %p52 = scmp.eq.s32.totalorder %s14, 3
    %p53 = por %p51, %p52
    %p54 = scmp.ne.s32.totalorder %s45, %s46
    %p55 = scmp.eq.s32.totalorder %s14, 0
    %p56 = por %p54, %p55
    %p57 = scmp.ne.s32.totalorder %s45, %s46
    %p58 = scmp.eq.s32.totalorder %s15, 3
    %p59 = por %p57, %p58
    %p61 = scmp.ne.s32.totalorder %s46, %s60
    %p62 = scmp.eq.s32.totalorder %s15, 0
    %p63 = por %p61, %p62
    %s65 = sadd.s32 %s64, 1
    %p68 = scmp.eq.s32.totalorder %s9, 3
    %p69 = scmp.ne.s32.totalorder %s64, %s66
    %p70 = scmp.eq.s32.totalorder %s9, 0
    %p71 = por %p69, %p70
    %p72 = scmp.ne.s32.totalorder %s64, %s66
    %p73 = scmp.eq.s32.totalorder %s14, 3
    %p74 = por %p72, %p73
    %p75 = scmp.ne.s32.totalorder %s66, %s67
    %p76 = scmp.eq.s32.totalorder %s14, 0
    %p77 = por %p75, %p76
    %p78 = scmp.ne.s32.totalorder %s66, %s67
    %p79 = scmp.eq.s32.totalorder %s15, 3
    %p80 = por %p78, %p79
    %p82 = scmp.ne.s32.totalorder %s67, %s81
    %p83 = scmp.eq.s32.totalorder %s15, 0
    %p84 = por %p82, %p83
    %s85 = ssub.s32 %s9, %s16
    %p86 = scmp.eq.s32.totalorder %s85, 0
    %s88 = sadd.s32 %s87, 1
    %s89 = scalar_select %p86, %s87, %s88
    %p92 = pneg %p86
    %p93 = scmp.eq.s32.totalorder %s9, 3
    %p94 = por %p92, %p93
    %p95 = scmp.ne.s32.totalorder %s87, %s90
    %p96 = scmp.eq.s32.totalorder %s9, 0
    %p97 = por %p95, %p96
    %p98 = scmp.ne.s32.totalorder %s87, %s90
    %p99 = scmp.eq.s32.totalorder %s14, 3
    %p100 = por %p98, %p99
    %p101 = scmp.ne.s32.totalorder %s90, %s91
    %p102 = scmp.eq.s32.totalorder %s14, 0
    %p103 = por %p101, %p102
    %p104 = scmp.ne.s32.totalorder %s90, %s91
    %p105 = scmp.eq.s32.totalorder %s15, 3
    %p106 = por %p104, %p105
    %p108 = scmp.ne.s32.totalorder %s91, %s107
    %p109 = scmp.eq.s32.totalorder %s15, 0
    %p110 = por %p108, %p109
    %p111 = scmp.le.s32.totalorder 1, %s9
    %p112 = scmp.lt.s32.totalorder %s9, 5
    %p113 = pnand %p111, %p112
    %p114 = pneg %p113
    // Predicated region
    $region9: #{decoder_forward.9} parent=5 // pred_check
      _
    $region10: #{decoder_forward.9} parent=5 // pred_check_branch
      %116 = sbr.rel (%p113) target = $region12
    $region11: #{decoder_forward.9} parent=5 // pred_region
      %s117 = ssub.s32 %s9, 1
      // Predicated region
      $region13: #{decoder_forward.9} parent=11 // pred_check
        %p118 = pneg %p56
      $region14: #{decoder_forward.9} parent=11 // pred_check_branch
        %120 = sbr.rel (%p118) target = $region16
      $region15: #{decoder_forward.9} parent=11 // pred_region
        _
      $region16: #{decoder_forward.9} parent=11 // pred_fallthru
        _
      // Predicated region
      $region17: #{decoder_forward.9} parent=11 // pred_check
        %p121 = pneg %p77
      $region18: #{decoder_forward.9} parent=11 // pred_check_branch
        %123 = sbr.rel (%p121) target = $region20
      $region19: #{decoder_forward.9} parent=11 // pred_region
        _
      $region20: #{decoder_forward.9} parent=11 // pred_fallthru
        _
    $region12: #{decoder_forward.9} parent=5 // pred_fallthru
      _
    %p124 = scmp.lt.s32.totalorder %s9, 4
    // Predicated region
    $region21: #{decoder_forward.9} parent=5 // pred_check
      %p125 = pneg %p124
    $region22: #{decoder_forward.9} parent=5 // pred_check_branch
      %127 = sbr.rel (%p125) target = $region24
    $region23: #{decoder_forward.9} parent=5 // pred_region
      // Predicated region
      $region25: #{decoder_forward.9} parent=23 // pred_check
        %p128 = pneg %p29
      $region26: #{decoder_forward.9} parent=23 // pred_check_branch
        %130 = sbr.rel (%p128) target = $region28
      $region27: #{decoder_forward.9} parent=23 // pred_region
        %s131 = smul.u32 58, %s9
        %p132 = scmp.lt.s32.totalorder %s131, 231
        %s133 = scalar_select %p132, %s131, 231
        %s134 = smul.addr %s133, 4
        %s135 = scalar_lea.vmem %s0, %s134
        %s136 = smul.u32 58, %s9
      $region28: #{decoder_forward.9} parent=23 // pred_fallthru
        _
    $region24: #{decoder_forward.9} parent=5 // pred_fallthru
      _
    %p137 = scmp.le.s32.totalorder 1, %s9
    %p138 = scmp.lt.s32.totalorder %s9, 5
    %p139 = pnand %p137, %p138
    %p140 = pneg %p139
    // Predicated region
    $region29: #{decoder_forward.9} parent=5 // pred_check
      _
    $region30: #{decoder_forward.9} parent=5 // pred_check_branch
      %142 = sbr.rel (%p139) target = $region32
    $region31: #{decoder_forward.9} parent=5 // pred_region
      %s143 = ssub.s32 %s9, 1
      %s144 = smul.u32 58, %s14
      %p145 = scmp.lt.s32.totalorder %s144, 231
      %s146 = scalar_select %p145, %s144, 231
      %s147 = smul.addr %s146, 4
      %s148 = scalar_lea.vmem %s0, %s147
      %p149 = pneg %p35
      %p150 = pneg %p32
      %p151 = pneg %p56
      %p152 = pneg %p53
      %p153 = pneg %p77
      %p154 = pneg %p74
      %p155 = pneg %p103
      %p156 = pneg %p100
      %s157 = smul.u32 58, %s14
      %p158 = scmp.lt.s32.totalorder %s157, 231
      %s159 = scalar_select %p158, %s157, 231
      %s160 = smul.addr %s159, 8
      %s161 = scalar_lea.vmem %s3, %s160
      %s162 = smul.u32 58, %s14
      %p163 = scmp.lt.s32.totalorder %s162, 231
      %s164 = scalar_select %p163, %s162, 231
      %s165 = smul.addr %s164, 4
      %s166 = scalar_lea.vmem %s0, %s165
      %s167 = smul.u32 58, %s14
      %s168 = smul.u32 58, %s14
      %p169 = scmp.lt.s32.totalorder %s168, 231
      %s170 = scalar_select %p169, %s168, 231
      %s171 = smul.addr %s170, 8
      %s172 = scalar_lea.vmem %s3, %s171
      %s173 = smul.u32 58, %s14
      %v175 = vld [vmem:[%s166] sm:$0xf]
      %v176 = vld [vmem:[%s166 + $0x4] sm:$0xf]
      %v177 = vld [vmem:[%s166 + $0x8] sm:$0xf]
      %v178 = vld [vmem:[%s166 + $0xc] sm:$0xf]
      %v179 = vld [vmem:[%s166 + $0x10] sm:$0xf]
      %v180 = vld [vmem:[%s166 + $0x14] sm:$0xf]
      %v181 = vld [vmem:[%s166 + $0x18] sm:$0xf]
      %v182 = vld [vmem:[%s166 + $0x1c] sm:$0xf]
      %v183 = vld [vmem:[%s166 + $0x20] sm:$0xf]
      %v184 = vld [vmem:[%s166 + $0x24] sm:$0xf]
      %v185 = vld [vmem:[%s166 + $0x28] sm:$0xf]
      %v186 = vld [vmem:[%s166 + $0x2c] sm:$0xf]
      %v187 = vld [vmem:[%s166 + $0x30] sm:$0xf]
      %v188 = vld [vmem:[%s166 + $0x34] sm:$0xf]
      %v189 = vld [vmem:[%s166 + $0x38] sm:$0xf]
      %v190 = vld [vmem:[%s166 + $0x3c] sm:$0xf]
      %v191 = vld [vmem:[%s166 + $0x40] sm:$0xf]
      %v192 = vld [vmem:[%s166 + $0x44] sm:$0xf]
      %v193 = vld [vmem:[%s166 + $0x48] sm:$0xf]
      %v194 = vld [vmem:[%s166 + $0x4c] sm:$0xf]
      %v195 = vld [vmem:[%s166 + $0x50] sm:$0xf]
      %v196 = vld [vmem:[%s166 + $0x54] sm:$0xf]
      %v197 = vld [vmem:[%s166 + $0x58] sm:$0xf]
      %v198 = vld [vmem:[%s166 + $0x5c] sm:$0xf]
      %v199 = vld [vmem:[%s166 + $0x60] sm:$0xf]
      %v200 = vld [vmem:[%s166 + $0x64] sm:$0xf]
      %v201 = vld [vmem:[%s166 + $0x68] sm:$0xf]
      %v202 = vld [vmem:[%s166 + $0x6c] sm:$0xf]
      %v203 = vld [vmem:[%s166 + $0x70] sm:$0xf]
      %v204 = vld [vmem:[%s166 + $0x74] sm:$0xf]
      %v205 = vld [vmem:[%s166 + $0x78] sm:$0xf]
      %v206 = vld [vmem:[%s166 + $0x7c] sm:$0xf]
      %v207 = vld [vmem:[%s166 + $0x80] sm:$0xf]
      %v208 = vld [vmem:[%s166 + $0x84] sm:$0xf]
      %v209 = vld [vmem:[%s166 + $0x88] sm:$0xf]
      %v210 = vld [vmem:[%s166 + $0x8c] sm:$0xf]
      %v211 = vld [vmem:[%s166 + $0x90] sm:$0xf]
      %v212 = vld [vmem:[%s166 + $0x94] sm:$0xf]
      %v213 = vld [vmem:[%s166 + $0x98] sm:$0xf]
      %v214 = vld [vmem:[%s166 + $0x9c] sm:$0xf]
      %v215 = vld [vmem:[%s166 + $0xa0] sm:$0xf]
      %v216 = vld [vmem:[%s166 + $0xa4] sm:$0xf]
      %v217 = vld [vmem:[%s166 + $0xa8] sm:$0xf]
      %v218 = vld [vmem:[%s166 + $0xac] sm:$0xf]
      %v219 = vld [vmem:[%s166 + $0xb0] sm:$0xf]
      %v220 = vld [vmem:[%s166 + $0xb4] sm:$0xf]
      %v221 = vld [vmem:[%s166 + $0xb8] sm:$0xf]
      %v222 = vld [vmem:[%s166 + $0xbc] sm:$0xf]
      %v223 = vld [vmem:[%s166 + $0xc0] sm:$0xf]
      %v224 = vld [vmem:[%s166 + $0xc4] sm:$0xf]
      %v225 = vld [vmem:[%s166 + $0xc8] sm:$0xf]
      %v226 = vld [vmem:[%s166 + $0xcc] sm:$0xf]
      %v227 = vld [vmem:[%s166 + $0xd0] sm:$0xf]
      %v228 = vld [vmem:[%s166 + $0xd4] sm:$0xf]
      %v229 = vld [vmem:[%s166 + $0xd8] sm:$0xf]
      %v230 = vld [vmem:[%s166 + $0xdc] sm:$0xf]
      %v231 = vld [vmem:[%s166 + $0xe0] sm:$0xf]
      %v232 = vld [vmem:[%s166 + $0xe4] sm:$0xf]
      %v233 = vld [vmem:[%s1] sm:$0xf]
      %v234 = vld [vmem:[%s2] sm:$0x1]
      %v236 = vperm.slane %v234, 0
      %v296 = vunpack.c.l.b16 %v175
      %v297 = vunpack.c.l.b16 %v176
      %v298 = vunpack.c.l.b16 %v177
      %v299 = vunpack.c.l.b16 %v178
      %v300 = vunpack.c.l.b16 %v179
      %v301 = vunpack.c.l.b16 %v180
      %v302 = vunpack.c.l.b16 %v181
      %v303 = vunpack.c.l.b16 %v182
      %v304 = vunpack.c.l.b16 %v183
      %v305 = vunpack.c.l.b16 %v184
      %v306 = vunpack.c.l.b16 %v185
      %v307 = vunpack.c.l.b16 %v186
      %v308 = vunpack.c.l.b16 %v187
      %v309 = vunpack.c.l.b16 %v188
      %v310 = vunpack.c.l.b16 %v189
      %v311 = vunpack.c.l.b16 %v190
      %v312 = vunpack.c.l.b16 %v191
      %v313 = vunpack.c.l.b16 %v192
      %v314 = vunpack.c.l.b16 %v193
      %v315 = vunpack.c.l.b16 %v194
      %v316 = vunpack.c.l.b16 %v195
      %v317 = vunpack.c.l.b16 %v196
      %v318 = vunpack.c.l.b16 %v197
      %v319 = vunpack.c.l.b16 %v198
      %v320 = vunpack.c.l.b16 %v199
      %v321 = vunpack.c.l.b16 %v200
      %v322 = vunpack.c.l.b16 %v201
      %v323 = vunpack.c.l.b16 %v202
      %v324 = vunpack.c.l.b16 %v203
      %v325 = vunpack.c.l.b16 %v204
      %v326 = vunpack.c.l.b16 %v205
      %v327 = vunpack.c.l.b16 %v206
      %v328 = vunpack.c.l.b16 %v207
      %v329 = vunpack.c.l.b16 %v208
      %v330 = vunpack.c.l.b16 %v209
      %v331 = vunpack.c.l.b16 %v210
      %v332 = vunpack.c.l.b16 %v211
      %v333 = vunpack.c.l.b16 %v212
      %v334 = vunpack.c.l.b16 %v213
      %v335 = vunpack.c.l.b16 %v214
      %v336 = vunpack.c.l.b16 %v215
      %v337 = vunpack.c.l.b16 %v216
      %v338 = vunpack.c.l.b16 %v217
      %v339 = vunpack.c.l.b16 %v218
      %v340 = vunpack.c.l.b16 %v219
      %v341 = vunpack.c.l.b16 %v220
      %v342 = vunpack.c.l.b16 %v221
      %v343 = vunpack.c.l.b16 %v222
      %v344 = vunpack.c.l.b16 %v223
      %v345 = vunpack.c.l.b16 %v224
      %v346 = vunpack.c.l.b16 %v225
      %v347 = vunpack.c.l.b16 %v226
      %v348 = vunpack.c.l.b16 %v227
      %v349 = vunpack.c.l.b16 %v228
      %v350 = vunpack.c.l.b16 %v229
      %v351 = vunpack.c.l.b16 %v230
      %v352 = vunpack.c.l.b16 %v231
      %v353 = vunpack.c.l.b16 %v232
      %v354 = vpack.c.b16 %v297, %v296
      %v355 = vpack.c.b16 %v299, %v298
      %v356 = vpack.c.b16 %v301, %v300
      %v357 = vpack.c.b16 %v303, %v302
      %v358 = vpack.c.b16 %v305, %v304
      %v359 = vpack.c.b16 %v307, %v306
      %v360 = vpack.c.b16 %v309, %v308
      %v361 = vpack.c.b16 %v311, %v310
      %v362 = vpack.c.b16 %v313, %v312
      %v363 = vpack.c.b16 %v315, %v314
      %v364 = vpack.c.b16 %v317, %v316
      %v365 = vpack.c.b16 %v319, %v318
      %v366 = vpack.c.b16 %v321, %v320
      %v367 = vpack.c.b16 %v323, %v322
      %v368 = vpack.c.b16 %v325, %v324
      %v369 = vpack.c.b16 %v327, %v326
      %v370 = vpack.c.b16 %v329, %v328
      %v371 = vpack.c.b16 %v331, %v330
      %v372 = vpack.c.b16 %v333, %v332
      %v373 = vpack.c.b16 %v335, %v334
      %v374 = vpack.c.b16 %v337, %v336
      %v375 = vpack.c.b16 %v339, %v338
      %v376 = vpack.c.b16 %v341, %v340
      %v377 = vpack.c.b16 %v343, %v342
      %v378 = vpack.c.b16 %v345, %v344
      %v379 = vpack.c.b16 %v347, %v346
      %v380 = vpack.c.b16 %v349, %v348
      %v381 = vpack.c.b16 %v351, %v350
      %v382 = vpack.c.b16 %v353, %v352
      %vm383 = vcmask 64512
      %v385 = vsel %vm383, %v354, 0
      %v388 = vsel %vm383, %v355, 0
      %v391 = vsel %vm383, %v356, 0
      %v394 = vsel %vm383, %v357, 0
      %v397 = vsel %vm383, %v358, 0
      %v400 = vsel %vm383, %v359, 0
      %v403 = vsel %vm383, %v360, 0
      %v406 = vsel %vm383, %v361, 0
      %v409 = vsel %vm383, %v362, 0
      %v412 = vsel %vm383, %v363, 0
      %v415 = vsel %vm383, %v364, 0
      %v418 = vsel %vm383, %v365, 0
      %v421 = vsel %vm383, %v366, 0
      %v424 = vsel %vm383, %v367, 0
      %v427 = vsel %vm383, %v368, 0
      %v430 = vsel %vm383, %v369, 0
      %v433 = vsel %vm383, %v370, 0
      %v436 = vsel %vm383, %v371, 0
      %v439 = vsel %vm383, %v372, 0
      %v442 = vsel %vm383, %v373, 0
      %v445 = vsel %vm383, %v374, 0
      %v448 = vsel %vm383, %v375, 0
      %v451 = vsel %vm383, %v376, 0
      %v454 = vsel %vm383, %v377, 0
      %v457 = vsel %vm383, %v378, 0
      %v460 = vsel %vm383, %v379, 0
      %v463 = vsel %vm383, %v380, 0
      %v466 = vsel %vm383, %v381, 0
      %v469 = vsel %vm383, %v382, 0
      %vm471 = vcmask 1043456
      %v473 = vsel %vm471, %v233, 0
      %475 = vmatpush.bf16.msra.mxu0 0
      %476 = vmatpush.bf16.msra.mxu0 0
      %477 = vmatpush.bf16.msra.mxu0 0
      %478 = vmatpush.bf16.msra.mxu0 0
      %479 = vmatpush.bf16.msra.mxu0 0
      %480 = vmatpush.bf16.msra.mxu0 0
      %481 = vmatpush.bf16.msra.mxu0 0
      %482 = vmatpush.bf16.msra.mxu0 %v473
      %483 = vmatmul.bf16.gmra.mxu0 %v385
      %v484 = vpop.f32.mrf.mxu0
      %v485 = vadd.f32 %v236, %v484
      %v486 = vpop.f32.mrf.mxu0
      %v487 = vadd.f32 %v236, %v486
      %488 = vmatmul.bf16.gmra.mxu0 %v388
      %v489 = vpop.f32.mrf.mxu0
      %v490 = vadd.f32 %v236, %v489
      %v491 = vpop.f32.mrf.mxu0
      %v492 = vadd.f32 %v236, %v491
      %493 = vmatmul.bf16.gmra.mxu0 %v391
      %v494 = vpop.f32.mrf.mxu0
      %v495 = vadd.f32 %v236, %v494
      %v496 = vpop.f32.mrf.mxu0
      %v497 = vadd.f32 %v236, %v496
      %498 = vmatmul.bf16.gmra.mxu0 %v394
      %v499 = vpop.f32.mrf.mxu0
      %v500 = vadd.f32 %v236, %v499
      %v501 = vpop.f32.mrf.mxu0
      %v502 = vadd.f32 %v236, %v501
      %503 = vmatmul.bf16.gmra.mxu0 %v397
      %v504 = vpop.f32.mrf.mxu0
      %v505 = vadd.f32 %v236, %v504
      %v506 = vpop.f32.mrf.mxu0
      %v507 = vadd.f32 %v236, %v506
      %508 = vmatmul.bf16.gmra.mxu0 %v400
      %v509 = vpop.f32.mrf.mxu0
      %v510 = vadd.f32 %v236, %v509
      %v511 = vpop.f32.mrf.mxu0
      %v512 = vadd.f32 %v236, %v511
      %513 = vmatmul.bf16.gmra.mxu0 %v403
      %v514 = vpop.f32.mrf.mxu0
      %v515 = vadd.f32 %v236, %v514
      %v516 = vpop.f32.mrf.mxu0
      %v517 = vadd.f32 %v236, %v516
      %518 = vmatmul.bf16.gmra.mxu0 %v406
      %v519 = vpop.f32.mrf.mxu0
      %v520 = vadd.f32 %v236, %v519
      %v521 = vpop.f32.mrf.mxu0
      %v522 = vadd.f32 %v236, %v521
      %523 = vmatmul.bf16.gmra.mxu0 %v409
      %v524 = vpop.f32.mrf.mxu0
      %v525 = vadd.f32 %v236, %v524
      %v526 = vpop.f32.mrf.mxu0
      %v527 = vadd.f32 %v236, %v526
      %528 = vmatmul.bf16.gmra.mxu0 %v412
      %v529 = vpop.f32.mrf.mxu0
      %v530 = vadd.f32 %v236, %v529
      %v531 = vpop.f32.mrf.mxu0
      %v532 = vadd.f32 %v236, %v531
      %533 = vmatmul.bf16.gmra.mxu0 %v415
      %v534 = vpop.f32.mrf.mxu0
      %v535 = vadd.f32 %v236, %v534
      %v536 = vpop.f32.mrf.mxu0
      %v537 = vadd.f32 %v236, %v536
      %538 = vmatmul.bf16.gmra.mxu0 %v418
      %v539 = vpop.f32.mrf.mxu0
      %v540 = vadd.f32 %v236, %v539
      %v541 = vpop.f32.mrf.mxu0
      %v542 = vadd.f32 %v236, %v541
      %543 = vmatmul.bf16.gmra.mxu0 %v421
      %v544 = vpop.f32.mrf.mxu0
      %v545 = vadd.f32 %v236, %v544
      %v546 = vpop.f32.mrf.mxu0
      %v547 = vadd.f32 %v236, %v546
      %548 = vmatmul.bf16.gmra.mxu0 %v424
      %v549 = vpop.f32.mrf.mxu0
      %v550 = vadd.f32 %v236, %v549
      %v551 = vpop.f32.mrf.mxu0
      %v552 = vadd.f32 %v236, %v551
      %553 = vmatmul.bf16.gmra.mxu0 %v427
      %v554 = vpop.f32.mrf.mxu0
      %v555 = vadd.f32 %v236, %v554
      %v556 = vpop.f32.mrf.mxu0
      %v557 = vadd.f32 %v236, %v556
      %558 = vmatmul.bf16.gmra.mxu0 %v430
      %v559 = vpop.f32.mrf.mxu0
      %v560 = vadd.f32 %v236, %v559
      %v561 = vpop.f32.mrf.mxu0
      %v562 = vadd.f32 %v236, %v561
      %563 = vmatmul.bf16.gmra.mxu0 %v433
      %v564 = vpop.f32.mrf.mxu0
      %v565 = vadd.f32 %v236, %v564
      %v566 = vpop.f32.mrf.mxu0
      %v567 = vadd.f32 %v236, %v566
      %568 = vmatmul.bf16.gmra.mxu0 %v436
      %v569 = vpop.f32.mrf.mxu0
      %v570 = vadd.f32 %v236, %v569
      %v571 = vpop.f32.mrf.mxu0
      %v572 = vadd.f32 %v236, %v571
      %573 = vmatmul.bf16.gmra.mxu0 %v439
      %v574 = vpop.f32.mrf.mxu0
      %v575 = vadd.f32 %v236, %v574
      %v576 = vpop.f32.mrf.mxu0
      %v577 = vadd.f32 %v236, %v576
      %578 = vmatmul.bf16.gmra.mxu0 %v442
      %v579 = vpop.f32.mrf.mxu0
      %v580 = vadd.f32 %v236, %v579
      %v581 = vpop.f32.mrf.mxu0
      %v582 = vadd.f32 %v236, %v581
      %583 = vmatmul.bf16.gmra.mxu0 %v445
      %v584 = vpop.f32.mrf.mxu0
      %v585 = vadd.f32 %v236, %v584
      %v586 = vpop.f32.mrf.mxu0
      %v587 = vadd.f32 %v236, %v586
      %588 = vmatmul.bf16.gmra.mxu0 %v448
      %v589 = vpop.f32.mrf.mxu0
      %v590 = vadd.f32 %v236, %v589
      %v591 = vpop.f32.mrf.mxu0
      %v592 = vadd.f32 %v236, %v591
      %593 = vmatmul.bf16.gmra.mxu0 %v451
      %v594 = vpop.f32.mrf.mxu0
      %v595 = vadd.f32 %v236, %v594
      %v596 = vpop.f32.mrf.mxu0
      %v597 = vadd.f32 %v236, %v596
      %598 = vmatmul.bf16.gmra.mxu0 %v454
      %v599 = vpop.f32.mrf.mxu0
      %v600 = vadd.f32 %v236, %v599
      %v601 = vpop.f32.mrf.mxu0
      %v602 = vadd.f32 %v236, %v601
      %603 = vmatmul.bf16.gmra.mxu0 %v457
      %v604 = vpop.f32.mrf.mxu0
      %v605 = vadd.f32 %v236, %v604
      %v606 = vpop.f32.mrf.mxu0
      %v607 = vadd.f32 %v236, %v606
      %608 = vmatmul.bf16.gmra.mxu0 %v460
      %v609 = vpop.f32.mrf.mxu0
      %v610 = vadd.f32 %v236, %v609
      %v611 = vpop.f32.mrf.mxu0
      %v612 = vadd.f32 %v236, %v611
      %613 = vmatmul.bf16.gmra.mxu0 %v463
      %v614 = vpop.f32.mrf.mxu0
      %v615 = vadd.f32 %v236, %v614
      %v616 = vpop.f32.mrf.mxu0
      %v617 = vadd.f32 %v236, %v616
      %618 = vmatmul.bf16.gmra.mxu0 %v466
      %v619 = vpop.f32.mrf.mxu0
      %v620 = vadd.f32 %v236, %v619
      %v621 = vpop.f32.mrf.mxu0
      %v622 = vadd.f32 %v236, %v621
      %623 = vmatmul.bf16.gmra.mxu0 %v469
      %v624 = vpop.f32.mrf.mxu0
      %v625 = vadd.f32 %v236, %v624
      %v626 = vpop.f32.mrf.mxu0
      %v627 = vadd.f32 %v236, %v626
      %628 = vdwg.mxu0
      %629 = vst [vmem:[%s172] sm:$0xff] %v485
      %630 = vst [vmem:[%s172 + $0x8] sm:$0xff] %v487
      %631 = vst [vmem:[%s172 + $0x10] sm:$0xff] %v490
      %632 = vst [vmem:[%s172 + $0x18] sm:$0xff] %v492
      %633 = vst [vmem:[%s172 + $0x20] sm:$0xff] %v495
      %634 = vst [vmem:[%s172 + $0x28] sm:$0xff] %v497
      %635 = vst [vmem:[%s172 + $0x30] sm:$0xff] %v500
      %636 = vst [vmem:[%s172 + $0x38] sm:$0xff] %v502
      %637 = vst [vmem:[%s172 + $0x40] sm:$0xff] %v505
      %638 = vst [vmem:[%s172 + $0x48] sm:$0xff] %v507
      %639 = vst [vmem:[%s172 + $0x50] sm:$0xff] %v510
      %640 = vst [vmem:[%s172 + $0x58] sm:$0xff] %v512
      %641 = vst [vmem:[%s172 + $0x60] sm:$0xff] %v515
      %642 = vst [vmem:[%s172 + $0x68] sm:$0xff] %v517
      %643 = vst [vmem:[%s172 + $0x70] sm:$0xff] %v520
      %644 = vst [vmem:[%s172 + $0x78] sm:$0xff] %v522
      %645 = vst [vmem:[%s172 + $0x80] sm:$0xff] %v525
      %646 = vst [vmem:[%s172 + $0x88] sm:$0xff] %v527
      %647 = vst [vmem:[%s172 + $0x90] sm:$0xff] %v530
      %648 = vst [vmem:[%s172 + $0x98] sm:$0xff] %v532
      %649 = vst [vmem:[%s172 + $0xa0] sm:$0xff] %v535
      %650 = vst [vmem:[%s172 + $0xa8] sm:$0xff] %v537
      %651 = vst [vmem:[%s172 + $0xb0] sm:$0xff] %v540
      %652 = vst [vmem:[%s172 + $0xb8] sm:$0xff] %v542
      %653 = vst [vmem:[%s172 + $0xc0] sm:$0xff] %v545
      %654 = vst [vmem:[%s172 + $0xc8] sm:$0xff] %v547
      %655 = vst [vmem:[%s172 + $0xd0] sm:$0xff] %v550
      %656 = vst [vmem:[%s172 + $0xd8] sm:$0xff] %v552
      %657 = vst [vmem:[%s172 + $0xe0] sm:$0xff] %v555
      %658 = vst [vmem:[%s172 + $0xe8] sm:$0xff] %v557
      %659 = vst [vmem:[%s172 + $0xf0] sm:$0xff] %v560
      %660 = vst [vmem:[%s172 + $0xf8] sm:$0xff] %v562
      %661 = vst [vmem:[%s172 + $0x100] sm:$0xff] %v565
      %662 = vst [vmem:[%s172 + $0x108] sm:$0xff] %v567
      %663 = vst [vmem:[%s172 + $0x110] sm:$0xff] %v570
      %664 = vst [vmem:[%s172 + $0x118] sm:$0xff] %v572
      %665 = vst [vmem:[%s172 + $0x120] sm:$0xff] %v575
      %666 = vst [vmem:[%s172 + $0x128] sm:$0xff] %v577
      %667 = vst [vmem:[%s172 + $0x130] sm:$0xff] %v580
      %668 = vst [vmem:[%s172 + $0x138] sm:$0xff] %v582
      %669 = vst [vmem:[%s172 + $0x140] sm:$0xff] %v585
      %670 = vst [vmem:[%s172 + $0x148] sm:$0xff] %v587
      %671 = vst [vmem:[%s172 + $0x150] sm:$0xff] %v590
      %672 = vst [vmem:[%s172 + $0x158] sm:$0xff] %v592
      %673 = vst [vmem:[%s172 + $0x160] sm:$0xff] %v595
      %674 = vst [vmem:[%s172 + $0x168] sm:$0xff] %v597
      %675 = vst [vmem:[%s172 + $0x170] sm:$0xff] %v600
      %676 = vst [vmem:[%s172 + $0x178] sm:$0xff] %v602
      %677 = vst [vmem:[%s172 + $0x180] sm:$0xff] %v605
      %678 = vst [vmem:[%s172 + $0x188] sm:$0xff] %v607
      %679 = vst [vmem:[%s172 + $0x190] sm:$0xff] %v610
      %680 = vst [vmem:[%s172 + $0x198] sm:$0xff] %v612
      %681 = vst [vmem:[%s172 + $0x1a0] sm:$0xff] %v615
      %682 = vst [vmem:[%s172 + $0x1a8] sm:$0xff] %v617
      %683 = vst [vmem:[%s172 + $0x1b0] sm:$0xff] %v620
      %684 = vst [vmem:[%s172 + $0x1b8] sm:$0xff] %v622
      %685 = vst [vmem:[%s172 + $0x1c0] sm:$0xff] %v625
      %686 = vst [vmem:[%s172 + $0x1c8] sm:$0xff] %v627
      %s687 = smul.u32 58, %s14
      %p688 = scmp.lt.s32.totalorder %s687, 231
      %s689 = scalar_select %p688, %s687, 231
      %s690 = smul.addr %s689, 8
      %s691 = scalar_lea.vmem %s3, %s690
      // Predicated region
      $region33: #{decoder_forward.9} parent=31 // pred_check
        %p692 = pneg %p100
      $region34: #{decoder_forward.9} parent=31 // pred_check_branch
        %694 = sbr.rel (%p692) target = $region36
      $region35: #{decoder_forward.9} parent=31 // pred_region
        %s695 = smul.u32 58, %s14
      $region36: #{decoder_forward.9} parent=31 // pred_fallthru
        _
    $region32: #{decoder_forward.9} parent=5 // pred_fallthru
      _
    %p696 = scmp.le.s32.totalorder 2, %s9
    // Predicated region
    $region37: #{decoder_forward.9} parent=5 // pred_check
      %p697 = pneg %p696
    $region38: #{decoder_forward.9} parent=5 // pred_check_branch
      %699 = sbr.rel (%p697) target = $region40
    $region39: #{decoder_forward.9} parent=5 // pred_region
      %s700 = ssub.s32 %s9, 2
      // Predicated region
      $region41: #{decoder_forward.9} parent=39 // pred_check
        %p701 = pneg %p106
      $region42: #{decoder_forward.9} parent=39 // pred_check_branch
        %703 = sbr.rel (%p701) target = $region44
      $region43: #{decoder_forward.9} parent=39 // pred_region
        %s704 = smul.u32 58, %s15
        %p705 = scmp.lt.s32.totalorder %s704, 231
        %s706 = scalar_select %p705, %s704, 231
        %s707 = smul.addr %s706, 8
        %s708 = scalar_lea.vmem %s3, %s707
      $region44: #{decoder_forward.9} parent=39 // pred_fallthru
        _
    $region40: #{decoder_forward.9} parent=5 // pred_fallthru
      _
  $region6: #{decoder_forward.9} parent=0 // loop_footer
    %s13 = sadd.s32 1, %s9
  $region7: #{decoder_forward.9} parent=0 // loop_footer_branch
    %8 = sbr.rel target = $region3
  $region8: #{decoder_forward.9} parent=0 // loop_exit
    _

</llo_original>
